<compile_context>
chip_gen: v7x
topology: tpu7x:2x2x1
jax: 0.10.0
libtpu: 0.0.40
codegen_flags: <defaults>
</compile_context>

<pallas_src>
import jax
import jax.numpy as jnp
from jax import lax
from jax.experimental import pallas as pl
from jax.experimental.pallas import tpu as pltpu

# ----------------------------- config -----------------------------
B = 2
CIN = 4
L_IN = 16
COUT = 32          # conv out channels == rnn input size
KS = 6
STRIDE = 2
HID = 32           # lstm hidden size
N_HEADS = 4
ATT_HID = 32
APP_ORDER = (0,)   # 0 -> RNN, nonzero -> VQ (none configured)


# ------------------------ fused kernel body ------------------------
def _encoder_fused_kernel(x_ref, len_ref, wf_ref, bf_ref, whh_ref,
                          wh_ref, bh_ref, wo_ref, bo_ref, o_ref,
                          patches_sc, hseq_sc):
    # x_ref   : (CIN*B, L)   channel-major rows (row = c*B + b)
    # len_ref : (B, 1)       int32 corrected lengths
    # wf_ref  : (CIN*KS, 4H) conv weight folded with LSTM W_ih
    # bf_ref  : (1, 4H)      conv bias folded with (b_ih + b_hh)
    # whh_ref : (H, 4H)
    # wh_ref  : (H, nH*AH)   attention hidden proj, heads batched along lanes
    # bh_ref  : (1, nH*AH)
    # wo_ref  : (nH*AH, nH*H) block-diagonal per-head output proj
    # bo_ref  : (1, nH*H)
    # o_ref   : (B, nH*H)    lane-dense (128-wide) output
    CB, L = x_ref.shape
    Bb = len_ref.shape[0]
    Cin = CB // Bb
    T = (L - KS) // STRIDE + 1
    H = whh_ref.shape[0]
    nH = o_ref.shape[1] // H

    xv = x_ref[...]                    # whole input lives in one vreg tile
    lens = len_ref[...]                # (B, 1) int32

    # ---- stage 1: im2col (static slices -> VMEM scratch) + one fused matmul ----
    # patches[t*B + b, c*KS + k] = x[b, c, t*STRIDE + k]
    for t in range(T):
        lo = t * STRIDE
        for c in range(Cin):
            patches_sc[t * Bb:(t + 1) * Bb, c * KS:(c + 1) * KS] = \
                xv[c * Bb:(c + 1) * Bb, lo:lo + KS]
    # Conv1d + LSTM input projection fused into a single (T*B, CIN*KS)@(CIN*KS, 4H)
    gates_x = jnp.dot(patches_sc[...], wf_ref[...],
                      preferred_element_type=jnp.float32) + bf_ref[...]   # (T*B, 4H)

    # ---- stage 2: LSTM recurrence (fully unrolled; only h@Whh on serial path) ----
    whh = whh_ref[...]
    h = jnp.zeros((Bb, H), jnp.float32)
    c_st = jnp.zeros((Bb, H), jnp.float32)
    for t in range(T):
        gates = gates_x[t * Bb:(t + 1) * Bb, :] + jnp.dot(
            h, whh, preferred_element_type=jnp.float32)       # (B, 4H), order i,f,g,o
        i_g = jax.nn.sigmoid(gates[:, 0:H])
        f_g = jax.nn.sigmoid(gates[:, H:2 * H])
        g_g = jnp.tanh(gates[:, 2 * H:3 * H])
        o_g = jax.nn.sigmoid(gates[:, 3 * H:4 * H])
        c_new = f_g * c_st + i_g * g_g
        h_new = o_g * jnp.tanh(c_new)
        # pack_padded / pad_packed semantics: freeze state, zero padded outputs
        active = t < lens                                     # (B, 1) bool
        h = jnp.where(active, h_new, h)
        c_st = jnp.where(active, c_new, c_st)
        hseq_sc[t * Bb:(t + 1) * Bb, :] = jnp.where(active, h_new,
                                                    jnp.zeros_like(h_new))

    # ---- stage 3: multi-head attention (heads batched to 128 lanes) + L2 norm ----
    hs = hseq_sc[...]                                          # (T*B, H)
    hid = jnp.tanh(jnp.dot(hs, wh_ref[...],
                           preferred_element_type=jnp.float32) + bh_ref[...])
    score = jnp.dot(hid, wo_ref[...],
                    preferred_element_type=jnp.float32) + bo_ref[...]     # (T*B, nH*H)

    # softmax over time (dim=1 of the (B,T,H) view), per batch row / head column
    score_t = [score[t * Bb:(t + 1) * Bb, :] for t in range(T)]
    m = score_t[0]
    for t in range(1, T):
        m = jnp.maximum(m, score_t[t])
    e_t = [jnp.exp(s - m) for s in score_t]
    denom = e_t[0]
    for t in range(1, T):
        denom = denom + e_t[t]
    inv = pl.reciprocal(denom, approx=True)                    # EUP, off the VALU slot
    alpha_t = [e * inv for e in e_t]                           # (B, nH*H) each

    # per-head pooled embedding: emb_h = sum_t alpha_h[:, t, :] * h[:, t, :]
    pooled = []
    for hd in range(nH):
        acc = jnp.zeros((Bb, H), jnp.float32)
        for t in range(T):
            acc = acc + alpha_t[t][:, hd * H:(hd + 1) * H] * hs[t * Bb:(t + 1) * Bb, :]
        pooled.append(acc)

    # F.normalize(p=2, dim=1): x / max(||x||, 1e-12) == x * rsqrt(max(||x||^2, 1e-24))
    sumsq = jnp.zeros((Bb, 1), jnp.float32)
    for hd in range(nH):
        sumsq = sumsq + jnp.sum(pooled[hd] * pooled[hd], axis=1, keepdims=True)
    rnorm = lax.rsqrt(jnp.maximum(sumsq, 1e-24))
    for hd in range(nH):
        o_ref[:, hd * H:(hd + 1) * H] = pooled[hd] * rnorm


# -------------------------- host-side prep --------------------------
def fuse_params(params):
    """One-time algebraic folding of the module weights into kernel operands."""
    cout, cin, ks = params["conv_w"].shape
    w2 = params["conv_w"].reshape(cout, cin * ks).T              # (CIN*KS, COUT)
    wih_t = params["rnn_wih"][0].T                               # (COUT, 4H)
    w_fused = jnp.dot(w2, wih_t)                                 # (CIN*KS, 4H)
    b_fused = (jnp.dot(params["conv_b"][None, :], wih_t)
               + (params["rnn_bih"][0] + params["rnn_bhh"][0])[None, :])   # (1, 4H)
    whh = params["rnn_whh"][0].T                                 # (H, 4H)

    nH, H, AH = params["att_wh"].shape
    wh_cat = jnp.transpose(params["att_wh"], (1, 0, 2)).reshape(H, nH * AH)
    bh_cat = params["att_bh"].reshape(1, nH * AH)
    wo_bd = jax.scipy.linalg.block_diag(
        *[params["att_wo"][h] for h in range(nH)]).astype(jnp.float32)     # (nH*AH, nH*H)
    bo_cat = params["att_bo"].reshape(1, nH * params["att_wo"].shape[2])
    return dict(w_fused=w_fused, b_fused=b_fused, whh=whh,
                wh_cat=wh_cat, bh_cat=bh_cat, wo_bd=wo_bd, bo_cat=bo_cat)


def _full_spec(shape):
    return pl.BlockSpec(shape, lambda i, _s=len(shape): (0,) * _s)


def audio_rnn_encoder_forward(fused, x_ncl, lengths_list):
    Bb, Cin, L = x_ncl.shape
    T = (L - KS) // STRIDE + 1
    nH_H = fused["wo_bd"].shape[1]

    # length correction: cor = int((l - (ks - stride)) / stride) (same as PyTorch lambda)
    l_corr = jnp.array([int((y - (KS - STRIDE)) / STRIDE) for y in lengths_list],
                       dtype=jnp.int32).reshape(Bb, 1)
    # channel-major 2-D view so the kernel only needs clean static 2-D slices
    x2d = jnp.transpose(x_ncl, (1, 0, 2)).reshape(Cin * Bb, L)

    # The fused kernel implements app_order == (0,): Conv -> one RNN -> attention -> L2.
    # TODO(synk): VQ_EMA_layer path (app_order entries != 0) is external to this module
    # and not configured here (VQ n_layers = 0).
    assert tuple(APP_ORDER) == (0,)

    out = pl.pallas_call(
        _encoder_fused_kernel,
        out_shape=jax.ShapeDtypeStruct((Bb, nH_H), jnp.float32),
        grid=(1,),
        in_specs=[_full_spec(x2d.shape),
                  _full_spec(l_corr.shape),
                  _full_spec(fused["w_fused"].shape),
                  _full_spec(fused["b_fused"].shape),
                  _full_spec(fused["whh"].shape),
                  _full_spec(fused["wh_cat"].shape),
                  _full_spec(fused["bh_cat"].shape),
                  _full_spec(fused["wo_bd"].shape),
                  _full_spec(fused["bo_cat"].shape)],
        out_specs=_full_spec((Bb, nH_H)),
        scratch_shapes=[pltpu.VMEM((T * Bb, Cin * KS), jnp.float32),   # im2col patches
                        pltpu.VMEM((T * Bb, HID), jnp.float32)],       # LSTM output seq
        compiler_params=pltpu.CompilerParams(dimension_semantics=("arbitrary",)),
    )(x2d, l_corr, fused["w_fused"], fused["b_fused"], fused["whh"],
      fused["wh_cat"], fused["bh_cat"], fused["wo_bd"], fused["bo_cat"])
    return out


# ------------------------------ main ------------------------------
if __name__ == "__main__":
    key = jax.random.PRNGKey(0)
    keys = jax.random.split(key, 12)

    params = {
        # Conv1d(in=4, out=32, ks=6, stride=2, padding=0)
        "conv_w": 0.1 * jax.random.normal(keys[0], (COUT, CIN, KS), jnp.float32),
        "conv_b": 0.1 * jax.random.normal(keys[1], (COUT,), jnp.float32),
        # LSTM(input_size=32, hidden=32, 1 layer, unidirectional)
        "rnn_wih": [0.1 * jax.random.normal(keys[2], (4 * HID, COUT), jnp.float32)],
        "rnn_whh": [0.1 * jax.random.normal(keys[3], (4 * HID, HID), jnp.float32)],
        "rnn_bih": [0.1 * jax.random.normal(keys[4], (4 * HID,), jnp.float32)],
        "rnn_bhh": [0.1 * jax.random.normal(keys[5], (4 * HID,), jnp.float32)],
        # multi_attention(in_size=32, hidden_size=32, heads=4)
        "att_wh": 0.1 * jax.random.normal(keys[6], (N_HEADS, HID, ATT_HID), jnp.float32),
        "att_bh": 0.1 * jax.random.normal(keys[7], (N_HEADS, 1, ATT_HID), jnp.float32),
        "att_wo": 0.1 * jax.random.normal(keys[8], (N_HEADS, ATT_HID, HID), jnp.float32),
        "att_bo": 0.1 * jax.random.normal(keys[9], (N_HEADS, 1, HID), jnp.float32),
    }

    # input: NCL audio-feature tensor, per-example lengths (python list, like PyTorch)
    x = jax.random.normal(keys[10], (B, CIN, L_IN), jnp.float32)
    lengths = [16, 12]

    fused = fuse_params(params)          # one-time host-side weight folding
    out = audio_rnn_encoder_forward(fused, x, lengths)
    out = jax.block_until_ready(out)

    assert out.shape == (B, N_HEADS * HID)
    assert bool(jnp.all(jnp.isfinite(out)))
    # rows should be L2-normalized
    assert bool(jnp.allclose(jnp.linalg.norm(out, axis=1), 1.0, atol=1e-4))
    print("KERNEL_OK")
</pallas_src>

<mosaic_0001>
module attributes {stable_mosaic.version = 11 : i64} {
  func.func @_encoder_fused_kernel(%arg0: i32, %arg1: memref<8x16xf32, #tpu.memory_space<vmem>>, %arg2: memref<2x1xi32, #tpu.memory_space<vmem>>, %arg3: memref<24x128xf32, #tpu.memory_space<vmem>>, %arg4: memref<1x128xf32, #tpu.memory_space<vmem>>, %arg5: memref<32x128xf32, #tpu.memory_space<vmem>>, %arg6: memref<32x128xf32, #tpu.memory_space<vmem>>, %arg7: memref<1x128xf32, #tpu.memory_space<vmem>>, %arg8: memref<128x128xf32, #tpu.memory_space<vmem>>, %arg9: memref<1x128xf32, #tpu.memory_space<vmem>>, %arg10: memref<2x128xf32, #tpu.memory_space<vmem>>, %arg11: memref<12x24xf32, #tpu.memory_space<vmem>>, %arg12: memref<12x32xf32, #tpu.memory_space<vmem>>) attributes {dimension_semantics = [#tpu.dimension_semantics<arbitrary>], iteration_bounds = array<i64: 1>, scalar_prefetch = 0 : i64, scratch_operands = 2 : i64, tpu.core_type = #tpu.core_type<tc>, window_params = [{pipeline_mode = #tpu.pipeline_mode<synchronous>, transform_indices = @transform_0, window_bounds = array<i64: 8, 16>}, {pipeline_mode = #tpu.pipeline_mode<synchronous>, transform_indices = @transform_1, window_bounds = array<i64: 2, 1>}, {pipeline_mode = #tpu.pipeline_mode<synchronous>, transform_indices = @transform_2, window_bounds = array<i64: 24, 128>}, {pipeline_mode = #tpu.pipeline_mode<synchronous>, transform_indices = @transform_3, window_bounds = array<i64: 1, 128>}, {pipeline_mode = #tpu.pipeline_mode<synchronous>, transform_indices = @transform_4, window_bounds = array<i64: 32, 128>}, {pipeline_mode = #tpu.pipeline_mode<synchronous>, transform_indices = @transform_5, window_bounds = array<i64: 32, 128>}, {pipeline_mode = #tpu.pipeline_mode<synchronous>, transform_indices = @transform_6, window_bounds = array<i64: 1, 128>}, {pipeline_mode = #tpu.pipeline_mode<synchronous>, transform_indices = @transform_7, window_bounds = array<i64: 128, 128>}, {pipeline_mode = #tpu.pipeline_mode<synchronous>, transform_indices = @transform_8, window_bounds = array<i64: 1, 128>}, {pipeline_mode = #tpu.pipeline_mode<synchronous>, transform_indices = @transform_9, window_bounds = array<i64: 2, 128>}]} {
    %c0 = arith.constant 0 : index
    %c0_0 = arith.constant 0 : index
    %0 = vector.load %arg1[%c0, %c0_0] : memref<8x16xf32, #tpu.memory_space<vmem>>, vector<8x16xf32>
    %c0_1 = arith.constant 0 : index
    %c0_2 = arith.constant 0 : index
    %1 = vector.load %arg2[%c0_1, %c0_2] : memref<2x1xi32, #tpu.memory_space<vmem>>, vector<2x1xi32>
    %2 = vector.extract_strided_slice %0 {offsets = [0, 0], sizes = [2, 6], strides = [1, 1]} : vector<8x16xf32> to vector<2x6xf32>
    %c0_3 = arith.constant 0 : index
    %c0_4 = arith.constant 0 : index
    %3 = vector.load %arg11[%c0_3, %c0_4] : memref<12x24xf32, #tpu.memory_space<vmem>>, vector<2x6xf32>
    tpu.vector_store %arg11[%c0_3, %c0_4], %2 {strides = array<i32>} : memref<12x24xf32, #tpu.memory_space<vmem>>, vector<2x6xf32>,
    %4 = vector.extract_strided_slice %0 {offsets = [2, 0], sizes = [2, 6], strides = [1, 1]} : vector<8x16xf32> to vector<2x6xf32>
    %c0_5 = arith.constant 0 : index
    %c6 = arith.constant 6 : index
    %5 = vector.load %arg11[%c0_5, %c6] : memref<12x24xf32, #tpu.memory_space<vmem>>, vector<2x6xf32>
    tpu.vector_store %arg11[%c0_5, %c6], %4 {strides = array<i32>} : memref<12x24xf32, #tpu.memory_space<vmem>>, vector<2x6xf32>,
    %6 = vector.extract_strided_slice %0 {offsets = [4, 0], sizes = [2, 6], strides = [1, 1]} : vector<8x16xf32> to vector<2x6xf32>
    %c0_6 = arith.constant 0 : index
    %c12 = arith.constant 12 : index
    %7 = vector.load %arg11[%c0_6, %c12] : memref<12x24xf32, #tpu.memory_space<vmem>>, vector<2x6xf32>
    tpu.vector_store %arg11[%c0_6, %c12], %6 {strides = array<i32>} : memref<12x24xf32, #tpu.memory_space<vmem>>, vector<2x6xf32>,
    %8 = vector.extract_strided_slice %0 {offsets = [6, 0], sizes = [2, 6], strides = [1, 1]} : vector<8x16xf32> to vector<2x6xf32>
    %c0_7 = arith.constant 0 : index
    %c18 = arith.constant 18 : index
    %9 = vector.load %arg11[%c0_7, %c18] : memref<12x24xf32, #tpu.memory_space<vmem>>, vector<2x6xf32>
    tpu.vector_store %arg11[%c0_7, %c18], %8 {strides = array<i32>} : memref<12x24xf32, #tpu.memory_space<vmem>>, vector<2x6xf32>,
    %10 = vector.extract_strided_slice %0 {offsets = [0, 2], sizes = [2, 6], strides = [1, 1]} : vector<8x16xf32> to vector<2x6xf32>
    %c2 = arith.constant 2 : index
    %c0_8 = arith.constant 0 : index
    %11 = vector.load %arg11[%c2, %c0_8] : memref<12x24xf32, #tpu.memory_space<vmem>>, vector<2x6xf32>
    tpu.vector_store %arg11[%c2, %c0_8], %10 {strides = array<i32>} : memref<12x24xf32, #tpu.memory_space<vmem>>, vector<2x6xf32>,
    %12 = vector.extract_strided_slice %0 {offsets = [2, 2], sizes = [2, 6], strides = [1, 1]} : vector<8x16xf32> to vector<2x6xf32>
    %c2_9 = arith.constant 2 : index
    %c6_10 = arith.constant 6 : index
    %13 = vector.load %arg11[%c2_9, %c6_10] : memref<12x24xf32, #tpu.memory_space<vmem>>, vector<2x6xf32>
    tpu.vector_store %arg11[%c2_9, %c6_10], %12 {strides = array<i32>} : memref<12x24xf32, #tpu.memory_space<vmem>>, vector<2x6xf32>,
    %14 = vector.extract_strided_slice %0 {offsets = [4, 2], sizes = [2, 6], strides = [1, 1]} : vector<8x16xf32> to vector<2x6xf32>
    %c2_11 = arith.constant 2 : index
    %c12_12 = arith.constant 12 : index
    %15 = vector.load %arg11[%c2_11, %c12_12] : memref<12x24xf32, #tpu.memory_space<vmem>>, vector<2x6xf32>
    tpu.vector_store %arg11[%c2_11, %c12_12], %14 {strides = array<i32>} : memref<12x24xf32, #tpu.memory_space<vmem>>, vector<2x6xf32>,
    %16 = vector.extract_strided_slice %0 {offsets = [6, 2], sizes = [2, 6], strides = [1, 1]} : vector<8x16xf32> to vector<2x6xf32>
    %c2_13 = arith.constant 2 : index
    %c18_14 = arith.constant 18 : index
    %17 = vector.load %arg11[%c2_13, %c18_14] : memref<12x24xf32, #tpu.memory_space<vmem>>, vector<2x6xf32>
    tpu.vector_store %arg11[%c2_13, %c18_14], %16 {strides = array<i32>} : memref<12x24xf32, #tpu.memory_space<vmem>>, vector<2x6xf32>,
    %18 = vector.extract_strided_slice %0 {offsets = [0, 4], sizes = [2, 6], strides = [1, 1]} : vector<8x16xf32> to vector<2x6xf32>
    %c4 = arith.constant 4 : index
    %c0_15 = arith.constant 0 : index
    %19 = vector.load %arg11[%c4, %c0_15] : memref<12x24xf32, #tpu.memory_space<vmem>>, vector<2x6xf32>
    tpu.vector_store %arg11[%c4, %c0_15], %18 {strides = array<i32>} : memref<12x24xf32, #tpu.memory_space<vmem>>, vector<2x6xf32>,
    %20 = vector.extract_strided_slice %0 {offsets = [2, 4], sizes = [2, 6], strides = [1, 1]} : vector<8x16xf32> to vector<2x6xf32>
    %c4_16 = arith.constant 4 : index
    %c6_17 = arith.constant 6 : index
    %21 = vector.load %arg11[%c4_16, %c6_17] : memref<12x24xf32, #tpu.memory_space<vmem>>, vector<2x6xf32>
    tpu.vector_store %arg11[%c4_16, %c6_17], %20 {strides = array<i32>} : memref<12x24xf32, #tpu.memory_space<vmem>>, vector<2x6xf32>,
    %22 = vector.extract_strided_slice %0 {offsets = [4, 4], sizes = [2, 6], strides = [1, 1]} : vector<8x16xf32> to vector<2x6xf32>
    %c4_18 = arith.constant 4 : index
    %c12_19 = arith.constant 12 : index
    %23 = vector.load %arg11[%c4_18, %c12_19] : memref<12x24xf32, #tpu.memory_space<vmem>>, vector<2x6xf32>
    tpu.vector_store %arg11[%c4_18, %c12_19], %22 {strides = array<i32>} : memref<12x24xf32, #tpu.memory_space<vmem>>, vector<2x6xf32>,
    %24 = vector.extract_strided_slice %0 {offsets = [6, 4], sizes = [2, 6], strides = [1, 1]} : vector<8x16xf32> to vector<2x6xf32>
    %c4_20 = arith.constant 4 : index
    %c18_21 = arith.constant 18 : index
    %25 = vector.load %arg11[%c4_20, %c18_21] : memref<12x24xf32, #tpu.memory_space<vmem>>, vector<2x6xf32>
    tpu.vector_store %arg11[%c4_20, %c18_21], %24 {strides = array<i32>} : memref<12x24xf32, #tpu.memory_space<vmem>>, vector<2x6xf32>,
    %26 = vector.extract_strided_slice %0 {offsets = [0, 6], sizes = [2, 6], strides = [1, 1]} : vector<8x16xf32> to vector<2x6xf32>
    %c6_22 = arith.constant 6 : index
    %c0_23 = arith.constant 0 : index
    %27 = vector.load %arg11[%c6_22, %c0_23] : memref<12x24xf32, #tpu.memory_space<vmem>>, vector<2x6xf32>
    tpu.vector_store %arg11[%c6_22, %c0_23], %26 {strides = array<i32>} : memref<12x24xf32, #tpu.memory_space<vmem>>, vector<2x6xf32>,
    %28 = vector.extract_strided_slice %0 {offsets = [2, 6], sizes = [2, 6], strides = [1, 1]} : vector<8x16xf32> to vector<2x6xf32>
    %c6_24 = arith.constant 6 : index
    %c6_25 = arith.constant 6 : index
    %29 = vector.load %arg11[%c6_24, %c6_25] : memref<12x24xf32, #tpu.memory_space<vmem>>, vector<2x6xf32>
    tpu.vector_store %arg11[%c6_24, %c6_25], %28 {strides = array<i32>} : memref<12x24xf32, #tpu.memory_space<vmem>>, vector<2x6xf32>,
    %30 = vector.extract_strided_slice %0 {offsets = [4, 6], sizes = [2, 6], strides = [1, 1]} : vector<8x16xf32> to vector<2x6xf32>
    %c6_26 = arith.constant 6 : index
    %c12_27 = arith.constant 12 : index
    %31 = vector.load %arg11[%c6_26, %c12_27] : memref<12x24xf32, #tpu.memory_space<vmem>>, vector<2x6xf32>
    tpu.vector_store %arg11[%c6_26, %c12_27], %30 {strides = array<i32>} : memref<12x24xf32, #tpu.memory_space<vmem>>, vector<2x6xf32>,
    %32 = vector.extract_strided_slice %0 {offsets = [6, 6], sizes = [2, 6], strides = [1, 1]} : vector<8x16xf32> to vector<2x6xf32>
    %c6_28 = arith.constant 6 : index
    %c18_29 = arith.constant 18 : index
    %33 = vector.load %arg11[%c6_28, %c18_29] : memref<12x24xf32, #tpu.memory_space<vmem>>, vector<2x6xf32>
    tpu.vector_store %arg11[%c6_28, %c18_29], %32 {strides = array<i32>} : memref<12x24xf32, #tpu.memory_space<vmem>>, vector<2x6xf32>,
    %34 = vector.extract_strided_slice %0 {offsets = [0, 8], sizes = [2, 6], strides = [1, 1]} : vector<8x16xf32> to vector<2x6xf32>
    %c8 = arith.constant 8 : index
    %c0_30 = arith.constant 0 : index
    %35 = vector.load %arg11[%c8, %c0_30] : memref<12x24xf32, #tpu.memory_space<vmem>>, vector<2x6xf32>
    tpu.vector_store %arg11[%c8, %c0_30], %34 {strides = array<i32>} : memref<12x24xf32, #tpu.memory_space<vmem>>, vector<2x6xf32>,
    %36 = vector.extract_strided_slice %0 {offsets = [2, 8], sizes = [2, 6], strides = [1, 1]} : vector<8x16xf32> to vector<2x6xf32>
    %c8_31 = arith.constant 8 : index
    %c6_32 = arith.constant 6 : index
    %37 = vector.load %arg11[%c8_31, %c6_32] : memref<12x24xf32, #tpu.memory_space<vmem>>, vector<2x6xf32>
    tpu.vector_store %arg11[%c8_31, %c6_32], %36 {strides = array<i32>} : memref<12x24xf32, #tpu.memory_space<vmem>>, vector<2x6xf32>,
    %38 = vector.extract_strided_slice %0 {offsets = [4, 8], sizes = [2, 6], strides = [1, 1]} : vector<8x16xf32> to vector<2x6xf32>
    %c8_33 = arith.constant 8 : index
    %c12_34 = arith.constant 12 : index
    %39 = vector.load %arg11[%c8_33, %c12_34] : memref<12x24xf32, #tpu.memory_space<vmem>>, vector<2x6xf32>
    tpu.vector_store %arg11[%c8_33, %c12_34], %38 {strides = array<i32>} : memref<12x24xf32, #tpu.memory_space<vmem>>, vector<2x6xf32>,
    %40 = vector.extract_strided_slice %0 {offsets = [6, 8], sizes = [2, 6], strides = [1, 1]} : vector<8x16xf32> to vector<2x6xf32>
    %c8_35 = arith.constant 8 : index
    %c18_36 = arith.constant 18 : index
    %41 = vector.load %arg11[%c8_35, %c18_36] : memref<12x24xf32, #tpu.memory_space<vmem>>, vector<2x6xf32>
    tpu.vector_store %arg11[%c8_35, %c18_36], %40 {strides = array<i32>} : memref<12x24xf32, #tpu.memory_space<vmem>>, vector<2x6xf32>,
    %42 = vector.extract_strided_slice %0 {offsets = [0, 10], sizes = [2, 6], strides = [1, 1]} : vector<8x16xf32> to vector<2x6xf32>
    %c10 = arith.constant 10 : index
    %c0_37 = arith.constant 0 : index
    %43 = vector.load %arg11[%c10, %c0_37] : memref<12x24xf32, #tpu.memory_space<vmem>>, vector<2x6xf32>
    tpu.vector_store %arg11[%c10, %c0_37], %42 {strides = array<i32>} : memref<12x24xf32, #tpu.memory_space<vmem>>, vector<2x6xf32>,
    %44 = vector.extract_strided_slice %0 {offsets = [2, 10], sizes = [2, 6], strides = [1, 1]} : vector<8x16xf32> to vector<2x6xf32>
    %c10_38 = arith.constant 10 : index
    %c6_39 = arith.constant 6 : index
    %45 = vector.load %arg11[%c10_38, %c6_39] : memref<12x24xf32, #tpu.memory_space<vmem>>, vector<2x6xf32>
    tpu.vector_store %arg11[%c10_38, %c6_39], %44 {strides = array<i32>} : memref<12x24xf32, #tpu.memory_space<vmem>>, vector<2x6xf32>,
    %46 = vector.extract_strided_slice %0 {offsets = [4, 10], sizes = [2, 6], strides = [1, 1]} : vector<8x16xf32> to vector<2x6xf32>
    %c10_40 = arith.constant 10 : index
    %c12_41 = arith.constant 12 : index
    %47 = vector.load %arg11[%c10_40, %c12_41] : memref<12x24xf32, #tpu.memory_space<vmem>>, vector<2x6xf32>
    tpu.vector_store %arg11[%c10_40, %c12_41], %46 {strides = array<i32>} : memref<12x24xf32, #tpu.memory_space<vmem>>, vector<2x6xf32>,
    %48 = vector.extract_strided_slice %0 {offsets = [6, 10], sizes = [2, 6], strides = [1, 1]} : vector<8x16xf32> to vector<2x6xf32>
    %c10_42 = arith.constant 10 : index
    %c18_43 = arith.constant 18 : index
    %49 = vector.load %arg11[%c10_42, %c18_43] : memref<12x24xf32, #tpu.memory_space<vmem>>, vector<2x6xf32>
    tpu.vector_store %arg11[%c10_42, %c18_43], %48 {strides = array<i32>} : memref<12x24xf32, #tpu.memory_space<vmem>>, vector<2x6xf32>,
    %c0_44 = arith.constant 0 : index
    %c0_45 = arith.constant 0 : index
    %50 = vector.load %arg11[%c0_44, %c0_45] : memref<12x24xf32, #tpu.memory_space<vmem>>, vector<12x24xf32>
    %c0_46 = arith.constant 0 : index
    %c0_47 = arith.constant 0 : index
    %51 = vector.load %arg3[%c0_46, %c0_47] : memref<24x128xf32, #tpu.memory_space<vmem>>, vector<24x128xf32>
    %cst = arith.constant dense<0.000000e+00> : vector<12x128xf32>
    %52 = tpu.matmul %50, %51, %cst {dimension_numbers = #tpu.dot_dimension_numbers<[1], [0], [0], [1], [0, 0, 1, 1], [], []>} : vector<12x24xf32>, vector<24x128xf32>, vector<12x128xf32> -> vector<12x128xf32>
    %c0_48 = arith.constant 0 : index
    %c0_49 = arith.constant 0 : index
    %53 = vector.load %arg4[%c0_48, %c0_49] : memref<1x128xf32, #tpu.memory_space<vmem>>, vector<1x128xf32>
    %54 = vector.broadcast %53 : vector<1x128xf32> to vector<12x128xf32>
    %55 = arith.addf %52, %54 : vector<12x128xf32>
    %c0_50 = arith.constant 0 : index
    %c0_51 = arith.constant 0 : index
    %56 = vector.load %arg5[%c0_50, %c0_51] : memref<32x128xf32, #tpu.memory_space<vmem>>, vector<32x128xf32>
    %cst_52 = arith.constant 0.000000e+00 : f32
    %57 = vector.broadcast %cst_52 : f32 to vector<2x32xf32>
    %cst_53 = arith.constant 0.000000e+00 : f32
    %58 = vector.broadcast %cst_53 : f32 to vector<2x32xf32>
    %59 = vector.extract_strided_slice %55 {offsets = [0, 0], sizes = [2, 128], strides = [1, 1]} : vector<12x128xf32> to vector<2x128xf32>
    %cst_54 = arith.constant dense<0.000000e+00> : vector<2x128xf32>
    %60 = tpu.matmul %57, %56, %cst_54 {dimension_numbers = #tpu.dot_dimension_numbers<[1], [0], [0], [1], [0, 0, 1, 1], [], []>} : vector<2x32xf32>, vector<32x128xf32>, vector<2x128xf32> -> vector<2x128xf32>
    %61 = arith.addf %59, %60 : vector<2x128xf32>
    %62 = vector.extract_strided_slice %61 {offsets = [0, 0], sizes = [2, 32], strides = [1, 1]} : vector<2x128xf32> to vector<2x32xf32>
    %63 = arith.negf %62 : vector<2x32xf32>
    %64 = math.exp %63 : vector<2x32xf32>
    %cst_55 = arith.constant 1.000000e+00 : f32
    %65 = vector.broadcast %cst_55 : f32 to vector<2x32xf32>
    %66 = arith.addf %65, %64 : vector<2x32xf32>
    %67 = arith.divf %65, %66 : vector<2x32xf32>
    %68 = vector.extract_strided_slice %61 {offsets = [0, 32], sizes = [2, 32], strides = [1, 1]} : vector<2x128xf32> to vector<2x32xf32>
    %69 = arith.negf %68 : vector<2x32xf32>
    %70 = math.exp %69 : vector<2x32xf32>
    %cst_56 = arith.constant 1.000000e+00 : f32
    %71 = vector.broadcast %cst_56 : f32 to vector<2x32xf32>
    %72 = arith.addf %71, %70 : vector<2x32xf32>
    %73 = arith.divf %71, %72 : vector<2x32xf32>
    %74 = vector.extract_strided_slice %61 {offsets = [0, 64], sizes = [2, 32], strides = [1, 1]} : vector<2x128xf32> to vector<2x32xf32>
    %75 = math.tanh %74 : vector<2x32xf32>
    %76 = vector.extract_strided_slice %61 {offsets = [0, 96], sizes = [2, 32], strides = [1, 1]} : vector<2x128xf32> to vector<2x32xf32>
    %77 = arith.negf %76 : vector<2x32xf32>
    %78 = math.exp %77 : vector<2x32xf32>
    %cst_57 = arith.constant 1.000000e+00 : f32
    %79 = vector.broadcast %cst_57 : f32 to vector<2x32xf32>
    %80 = arith.addf %79, %78 : vector<2x32xf32>
    %81 = arith.divf %79, %80 : vector<2x32xf32>
    %82 = arith.mulf %73, %58 : vector<2x32xf32>
    %83 = arith.mulf %67, %75 : vector<2x32xf32>
    %84 = arith.addf %82, %83 : vector<2x32xf32>
    %85 = math.tanh %84 : vector<2x32xf32>
    %86 = arith.mulf %81, %85 : vector<2x32xf32>
    %c0_i32 = arith.constant 0 : i32
    %87 = vector.broadcast %c0_i32 : i32 to vector<2x1xi32>
    %88 = arith.cmpi sgt, %1, %87 : vector<2x1xi32>
    %89 = vector.shape_cast %88 : vector<2x1xi1> to vector<2x1xi1>
    %90 = vector.broadcast %89 : vector<2x1xi1> to vector<2x32xi1>
    %91 = arith.select %90, %86, %57 : vector<2x32xi1>, vector<2x32xf32>
    %92 = vector.shape_cast %88 : vector<2x1xi1> to vector<2x1xi1>
    %93 = vector.broadcast %92 : vector<2x1xi1> to vector<2x32xi1>
    %94 = arith.select %93, %84, %58 : vector<2x32xi1>, vector<2x32xf32>
    %cst_58 = arith.constant 0.000000e+00 : f32
    %95 = vector.broadcast %cst_58 : f32 to vector<2x32xf32>
    %96 = vector.shape_cast %88 : vector<2x1xi1> to vector<2x1xi1>
    %97 = vector.broadcast %96 : vector<2x1xi1> to vector<2x32xi1>
    %98 = arith.select %97, %86, %95 : vector<2x32xi1>, vector<2x32xf32>
    %c0_59 = arith.constant 0 : index
    %c0_60 = arith.constant 0 : index
    %99 = vector.load %arg12[%c0_59, %c0_60] : memref<12x32xf32, #tpu.memory_space<vmem>>, vector<2x32xf32>
    tpu.vector_store %arg12[%c0_59, %c0_60], %98 {strides = array<i32>} : memref<12x32xf32, #tpu.memory_space<vmem>>, vector<2x32xf32>,
    %100 = vector.extract_strided_slice %55 {offsets = [2, 0], sizes = [2, 128], strides = [1, 1]} : vector<12x128xf32> to vector<2x128xf32>
    %cst_61 = arith.constant dense<0.000000e+00> : vector<2x128xf32>
    %101 = tpu.matmul %91, %56, %cst_61 {dimension_numbers = #tpu.dot_dimension_numbers<[1], [0], [0], [1], [0, 0, 1, 1], [], []>} : vector<2x32xf32>, vector<32x128xf32>, vector<2x128xf32> -> vector<2x128xf32>
    %102 = arith.addf %100, %101 : vector<2x128xf32>
    %103 = vector.extract_strided_slice %102 {offsets = [0, 0], sizes = [2, 32], strides = [1, 1]} : vector<2x128xf32> to vector<2x32xf32>
    %104 = arith.negf %103 : vector<2x32xf32>
    %105 = math.exp %104 : vector<2x32xf32>
    %cst_62 = arith.constant 1.000000e+00 : f32
    %106 = vector.broadcast %cst_62 : f32 to vector<2x32xf32>
    %107 = arith.addf %106, %105 : vector<2x32xf32>
    %108 = arith.divf %106, %107 : vector<2x32xf32>
    %109 = vector.extract_strided_slice %102 {offsets = [0, 32], sizes = [2, 32], strides = [1, 1]} : vector<2x128xf32> to vector<2x32xf32>
    %110 = arith.negf %109 : vector<2x32xf32>
    %111 = math.exp %110 : vector<2x32xf32>
    %cst_63 = arith.constant 1.000000e+00 : f32
    %112 = vector.broadcast %cst_63 : f32 to vector<2x32xf32>
    %113 = arith.addf %112, %111 : vector<2x32xf32>
    %114 = arith.divf %112, %113 : vector<2x32xf32>
    %115 = vector.extract_strided_slice %102 {offsets = [0, 64], sizes = [2, 32], strides = [1, 1]} : vector<2x128xf32> to vector<2x32xf32>
    %116 = math.tanh %115 : vector<2x32xf32>
    %117 = vector.extract_strided_slice %102 {offsets = [0, 96], sizes = [2, 32], strides = [1, 1]} : vector<2x128xf32> to vector<2x32xf32>
    %118 = arith.negf %117 : vector<2x32xf32>
    %119 = math.exp %118 : vector<2x32xf32>
    %cst_64 = arith.constant 1.000000e+00 : f32
    %120 = vector.broadcast %cst_64 : f32 to vector<2x32xf32>
    %121 = arith.addf %120, %119 : vector<2x32xf32>
    %122 = arith.divf %120, %121 : vector<2x32xf32>
    %123 = arith.mulf %114, %94 : vector<2x32xf32>
    %124 = arith.mulf %108, %116 : vector<2x32xf32>
    %125 = arith.addf %123, %124 : vector<2x32xf32>
    %126 = math.tanh %125 : vector<2x32xf32>
    %127 = arith.mulf %122, %126 : vector<2x32xf32>
    %c1_i32 = arith.constant 1 : i32
    %128 = vector.broadcast %c1_i32 : i32 to vector<2x1xi32>
    %129 = arith.cmpi sgt, %1, %128 : vector<2x1xi32>
    %130 = vector.shape_cast %129 : vector<2x1xi1> to vector<2x1xi1>
    %131 = vector.broadcast %130 : vector<2x1xi1> to vector<2x32xi1>
    %132 = arith.select %131, %127, %91 : vector<2x32xi1>, vector<2x32xf32>
    %133 = vector.shape_cast %129 : vector<2x1xi1> to vector<2x1xi1>
    %134 = vector.broadcast %133 : vector<2x1xi1> to vector<2x32xi1>
    %135 = arith.select %134, %125, %94 : vector<2x32xi1>, vector<2x32xf32>
    %cst_65 = arith.constant 0.000000e+00 : f32
    %136 = vector.broadcast %cst_65 : f32 to vector<2x32xf32>
    %137 = vector.shape_cast %129 : vector<2x1xi1> to vector<2x1xi1>
    %138 = vector.broadcast %137 : vector<2x1xi1> to vector<2x32xi1>
    %139 = arith.select %138, %127, %136 : vector<2x32xi1>, vector<2x32xf32>
    %c2_66 = arith.constant 2 : index
    %c0_67 = arith.constant 0 : index
    %140 = vector.load %arg12[%c2_66, %c0_67] : memref<12x32xf32, #tpu.memory_space<vmem>>, vector<2x32xf32>
    tpu.vector_store %arg12[%c2_66, %c0_67], %139 {strides = array<i32>} : memref<12x32xf32, #tpu.memory_space<vmem>>, vector<2x32xf32>,
    %141 = vector.extract_strided_slice %55 {offsets = [4, 0], sizes = [2, 128], strides = [1, 1]} : vector<12x128xf32> to vector<2x128xf32>
    %cst_68 = arith.constant dense<0.000000e+00> : vector<2x128xf32>
    %142 = tpu.matmul %132, %56, %cst_68 {dimension_numbers = #tpu.dot_dimension_numbers<[1], [0], [0], [1], [0, 0, 1, 1], [], []>} : vector<2x32xf32>, vector<32x128xf32>, vector<2x128xf32> -> vector<2x128xf32>
    %143 = arith.addf %141, %142 : vector<2x128xf32>
    %144 = vector.extract_strided_slice %143 {offsets = [0, 0], sizes = [2, 32], strides = [1, 1]} : vector<2x128xf32> to vector<2x32xf32>
    %145 = arith.negf %144 : vector<2x32xf32>
    %146 = math.exp %145 : vector<2x32xf32>
    %cst_69 = arith.constant 1.000000e+00 : f32
    %147 = vector.broadcast %cst_69 : f32 to vector<2x32xf32>
    %148 = arith.addf %147, %146 : vector<2x32xf32>
    %149 = arith.divf %147, %148 : vector<2x32xf32>
    %150 = vector.extract_strided_slice %143 {offsets = [0, 32], sizes = [2, 32], strides = [1, 1]} : vector<2x128xf32> to vector<2x32xf32>
    %151 = arith.negf %150 : vector<2x32xf32>
    %152 = math.exp %151 : vector<2x32xf32>
    %cst_70 = arith.constant 1.000000e+00 : f32
    %153 = vector.broadcast %cst_70 : f32 to vector<2x32xf32>
    %154 = arith.addf %153, %152 : vector<2x32xf32>
    %155 = arith.divf %153, %154 : vector<2x32xf32>
    %156 = vector.extract_strided_slice %143 {offsets = [0, 64], sizes = [2, 32], strides = [1, 1]} : vector<2x128xf32> to vector<2x32xf32>
    %157 = math.tanh %156 : vector<2x32xf32>
    %158 = vector.extract_strided_slice %143 {offsets = [0, 96], sizes = [2, 32], strides = [1, 1]} : vector<2x128xf32> to vector<2x32xf32>
    %159 = arith.negf %158 : vector<2x32xf32>
    %160 = math.exp %159 : vector<2x32xf32>
    %cst_71 = arith.constant 1.000000e+00 : f32
    %161 = vector.broadcast %cst_71 : f32 to vector<2x32xf32>
    %162 = arith.addf %161, %160 : vector<2x32xf32>
    %163 = arith.divf %161, %162 : vector<2x32xf32>
    %164 = arith.mulf %155, %135 : vector<2x32xf32>
    %165 = arith.mulf %149, %157 : vector<2x32xf32>
    %166 = arith.addf %164, %165 : vector<2x32xf32>
    %167 = math.tanh %166 : vector<2x32xf32>
    %168 = arith.mulf %163, %167 : vector<2x32xf32>
    %c2_i32 = arith.constant 2 : i32
    %169 = vector.broadcast %c2_i32 : i32 to vector<2x1xi32>
    %170 = arith.cmpi sgt, %1, %169 : vector<2x1xi32>
    %171 = vector.shape_cast %170 : vector<2x1xi1> to vector<2x1xi1>
    %172 = vector.broadcast %171 : vector<2x1xi1> to vector<2x32xi1>
    %173 = arith.select %172, %168, %132 : vector<2x32xi1>, vector<2x32xf32>
    %174 = vector.shape_cast %170 : vector<2x1xi1> to vector<2x1xi1>
    %175 = vector.broadcast %174 : vector<2x1xi1> to vector<2x32xi1>
    %176 = arith.select %175, %166, %135 : vector<2x32xi1>, vector<2x32xf32>
    %cst_72 = arith.constant 0.000000e+00 : f32
    %177 = vector.broadcast %cst_72 : f32 to vector<2x32xf32>
    %178 = vector.shape_cast %170 : vector<2x1xi1> to vector<2x1xi1>
    %179 = vector.broadcast %178 : vector<2x1xi1> to vector<2x32xi1>
    %180 = arith.select %179, %168, %177 : vector<2x32xi1>, vector<2x32xf32>
    %c4_73 = arith.constant 4 : index
    %c0_74 = arith.constant 0 : index
    %181 = vector.load %arg12[%c4_73, %c0_74] : memref<12x32xf32, #tpu.memory_space<vmem>>, vector<2x32xf32>
    tpu.vector_store %arg12[%c4_73, %c0_74], %180 {strides = array<i32>} : memref<12x32xf32, #tpu.memory_space<vmem>>, vector<2x32xf32>,
    %182 = vector.extract_strided_slice %55 {offsets = [6, 0], sizes = [2, 128], strides = [1, 1]} : vector<12x128xf32> to vector<2x128xf32>
    %cst_75 = arith.constant dense<0.000000e+00> : vector<2x128xf32>
    %183 = tpu.matmul %173, %56, %cst_75 {dimension_numbers = #tpu.dot_dimension_numbers<[1], [0], [0], [1], [0, 0, 1, 1], [], []>} : vector<2x32xf32>, vector<32x128xf32>, vector<2x128xf32> -> vector<2x128xf32>
    %184 = arith.addf %182, %183 : vector<2x128xf32>
    %185 = vector.extract_strided_slice %184 {offsets = [0, 0], sizes = [2, 32], strides = [1, 1]} : vector<2x128xf32> to vector<2x32xf32>
    %186 = arith.negf %185 : vector<2x32xf32>
    %187 = math.exp %186 : vector<2x32xf32>
    %cst_76 = arith.constant 1.000000e+00 : f32
    %188 = vector.broadcast %cst_76 : f32 to vector<2x32xf32>
    %189 = arith.addf %188, %187 : vector<2x32xf32>
    %190 = arith.divf %188, %189 : vector<2x32xf32>
    %191 = vector.extract_strided_slice %184 {offsets = [0, 32], sizes = [2, 32], strides = [1, 1]} : vector<2x128xf32> to vector<2x32xf32>
    %192 = arith.negf %191 : vector<2x32xf32>
    %193 = math.exp %192 : vector<2x32xf32>
    %cst_77 = arith.constant 1.000000e+00 : f32
    %194 = vector.broadcast %cst_77 : f32 to vector<2x32xf32>
    %195 = arith.addf %194, %193 : vector<2x32xf32>
    %196 = arith.divf %194, %195 : vector<2x32xf32>
    %197 = vector.extract_strided_slice %184 {offsets = [0, 64], sizes = [2, 32], strides = [1, 1]} : vector<2x128xf32> to vector<2x32xf32>
    %198 = math.tanh %197 : vector<2x32xf32>
    %199 = vector.extract_strided_slice %184 {offsets = [0, 96], sizes = [2, 32], strides = [1, 1]} : vector<2x128xf32> to vector<2x32xf32>
    %200 = arith.negf %199 : vector<2x32xf32>
    %201 = math.exp %200 : vector<2x32xf32>
    %cst_78 = arith.constant 1.000000e+00 : f32
    %202 = vector.broadcast %cst_78 : f32 to vector<2x32xf32>
    %203 = arith.addf %202, %201 : vector<2x32xf32>
    %204 = arith.divf %202, %203 : vector<2x32xf32>
    %205 = arith.mulf %196, %176 : vector<2x32xf32>
    %206 = arith.mulf %190, %198 : vector<2x32xf32>
    %207 = arith.addf %205, %206 : vector<2x32xf32>
    %208 = math.tanh %207 : vector<2x32xf32>
    %209 = arith.mulf %204, %208 : vector<2x32xf32>
    %c3_i32 = arith.constant 3 : i32
    %210 = vector.broadcast %c3_i32 : i32 to vector<2x1xi32>
    %211 = arith.cmpi sgt, %1, %210 : vector<2x1xi32>
    %212 = vector.shape_cast %211 : vector<2x1xi1> to vector<2x1xi1>
    %213 = vector.broadcast %212 : vector<2x1xi1> to vector<2x32xi1>
    %214 = arith.select %213, %209, %173 : vector<2x32xi1>, vector<2x32xf32>
    %215 = vector.shape_cast %211 : vector<2x1xi1> to vector<2x1xi1>
    %216 = vector.broadcast %215 : vector<2x1xi1> to vector<2x32xi1>
    %217 = arith.select %216, %207, %176 : vector<2x32xi1>, vector<2x32xf32>
    %cst_79 = arith.constant 0.000000e+00 : f32
    %218 = vector.broadcast %cst_79 : f32 to vector<2x32xf32>
    %219 = vector.shape_cast %211 : vector<2x1xi1> to vector<2x1xi1>
    %220 = vector.broadcast %219 : vector<2x1xi1> to vector<2x32xi1>
    %221 = arith.select %220, %209, %218 : vector<2x32xi1>, vector<2x32xf32>
    %c6_80 = arith.constant 6 : index
    %c0_81 = arith.constant 0 : index
    %222 = vector.load %arg12[%c6_80, %c0_81] : memref<12x32xf32, #tpu.memory_space<vmem>>, vector<2x32xf32>
    tpu.vector_store %arg12[%c6_80, %c0_81], %221 {strides = array<i32>} : memref<12x32xf32, #tpu.memory_space<vmem>>, vector<2x32xf32>,
    %223 = vector.extract_strided_slice %55 {offsets = [8, 0], sizes = [2, 128], strides = [1, 1]} : vector<12x128xf32> to vector<2x128xf32>
    %cst_82 = arith.constant dense<0.000000e+00> : vector<2x128xf32>
    %224 = tpu.matmul %214, %56, %cst_82 {dimension_numbers = #tpu.dot_dimension_numbers<[1], [0], [0], [1], [0, 0, 1, 1], [], []>} : vector<2x32xf32>, vector<32x128xf32>, vector<2x128xf32> -> vector<2x128xf32>
    %225 = arith.addf %223, %224 : vector<2x128xf32>
    %226 = vector.extract_strided_slice %225 {offsets = [0, 0], sizes = [2, 32], strides = [1, 1]} : vector<2x128xf32> to vector<2x32xf32>
    %227 = arith.negf %226 : vector<2x32xf32>
    %228 = math.exp %227 : vector<2x32xf32>
    %cst_83 = arith.constant 1.000000e+00 : f32
    %229 = vector.broadcast %cst_83 : f32 to vector<2x32xf32>
    %230 = arith.addf %229, %228 : vector<2x32xf32>
    %231 = arith.divf %229, %230 : vector<2x32xf32>
    %232 = vector.extract_strided_slice %225 {offsets = [0, 32], sizes = [2, 32], strides = [1, 1]} : vector<2x128xf32> to vector<2x32xf32>
    %233 = arith.negf %232 : vector<2x32xf32>
    %234 = math.exp %233 : vector<2x32xf32>
    %cst_84 = arith.constant 1.000000e+00 : f32
    %235 = vector.broadcast %cst_84 : f32 to vector<2x32xf32>
    %236 = arith.addf %235, %234 : vector<2x32xf32>
    %237 = arith.divf %235, %236 : vector<2x32xf32>
    %238 = vector.extract_strided_slice %225 {offsets = [0, 64], sizes = [2, 32], strides = [1, 1]} : vector<2x128xf32> to vector<2x32xf32>
    %239 = math.tanh %238 : vector<2x32xf32>
    %240 = vector.extract_strided_slice %225 {offsets = [0, 96], sizes = [2, 32], strides = [1, 1]} : vector<2x128xf32> to vector<2x32xf32>
    %241 = arith.negf %240 : vector<2x32xf32>
    %242 = math.exp %241 : vector<2x32xf32>
    %cst_85 = arith.constant 1.000000e+00 : f32
    %243 = vector.broadcast %cst_85 : f32 to vector<2x32xf32>
    %244 = arith.addf %243, %242 : vector<2x32xf32>
    %245 = arith.divf %243, %244 : vector<2x32xf32>
    %246 = arith.mulf %237, %217 : vector<2x32xf32>
    %247 = arith.mulf %231, %239 : vector<2x32xf32>
    %248 = arith.addf %246, %247 : vector<2x32xf32>
    %249 = math.tanh %248 : vector<2x32xf32>
    %250 = arith.mulf %245, %249 : vector<2x32xf32>
    %c4_i32 = arith.constant 4 : i32
    %251 = vector.broadcast %c4_i32 : i32 to vector<2x1xi32>
    %252 = arith.cmpi sgt, %1, %251 : vector<2x1xi32>
    %253 = vector.shape_cast %252 : vector<2x1xi1> to vector<2x1xi1>
    %254 = vector.broadcast %253 : vector<2x1xi1> to vector<2x32xi1>
    %255 = arith.select %254, %250, %214 : vector<2x32xi1>, vector<2x32xf32>
    %256 = vector.shape_cast %252 : vector<2x1xi1> to vector<2x1xi1>
    %257 = vector.broadcast %256 : vector<2x1xi1> to vector<2x32xi1>
    %258 = arith.select %257, %248, %217 : vector<2x32xi1>, vector<2x32xf32>
    %cst_86 = arith.constant 0.000000e+00 : f32
    %259 = vector.broadcast %cst_86 : f32 to vector<2x32xf32>
    %260 = vector.shape_cast %252 : vector<2x1xi1> to vector<2x1xi1>
    %261 = vector.broadcast %260 : vector<2x1xi1> to vector<2x32xi1>
    %262 = arith.select %261, %250, %259 : vector<2x32xi1>, vector<2x32xf32>
    %c8_87 = arith.constant 8 : index
    %c0_88 = arith.constant 0 : index
    %263 = vector.load %arg12[%c8_87, %c0_88] : memref<12x32xf32, #tpu.memory_space<vmem>>, vector<2x32xf32>
    tpu.vector_store %arg12[%c8_87, %c0_88], %262 {strides = array<i32>} : memref<12x32xf32, #tpu.memory_space<vmem>>, vector<2x32xf32>,
    %264 = vector.extract_strided_slice %55 {offsets = [10, 0], sizes = [2, 128], strides = [1, 1]} : vector<12x128xf32> to vector<2x128xf32>
    %cst_89 = arith.constant dense<0.000000e+00> : vector<2x128xf32>
    %265 = tpu.matmul %255, %56, %cst_89 {dimension_numbers = #tpu.dot_dimension_numbers<[1], [0], [0], [1], [0, 0, 1, 1], [], []>} : vector<2x32xf32>, vector<32x128xf32>, vector<2x128xf32> -> vector<2x128xf32>
    %266 = arith.addf %264, %265 : vector<2x128xf32>
    %267 = vector.extract_strided_slice %266 {offsets = [0, 0], sizes = [2, 32], strides = [1, 1]} : vector<2x128xf32> to vector<2x32xf32>
    %268 = arith.negf %267 : vector<2x32xf32>
    %269 = math.exp %268 : vector<2x32xf32>
    %cst_90 = arith.constant 1.000000e+00 : f32
    %270 = vector.broadcast %cst_90 : f32 to vector<2x32xf32>
    %271 = arith.addf %270, %269 : vector<2x32xf32>
    %272 = arith.divf %270, %271 : vector<2x32xf32>
    %273 = vector.extract_strided_slice %266 {offsets = [0, 32], sizes = [2, 32], strides = [1, 1]} : vector<2x128xf32> to vector<2x32xf32>
    %274 = arith.negf %273 : vector<2x32xf32>
    %275 = math.exp %274 : vector<2x32xf32>
    %cst_91 = arith.constant 1.000000e+00 : f32
    %276 = vector.broadcast %cst_91 : f32 to vector<2x32xf32>
    %277 = arith.addf %276, %275 : vector<2x32xf32>
    %278 = arith.divf %276, %277 : vector<2x32xf32>
    %279 = vector.extract_strided_slice %266 {offsets = [0, 64], sizes = [2, 32], strides = [1, 1]} : vector<2x128xf32> to vector<2x32xf32>
    %280 = math.tanh %279 : vector<2x32xf32>
    %281 = vector.extract_strided_slice %266 {offsets = [0, 96], sizes = [2, 32], strides = [1, 1]} : vector<2x128xf32> to vector<2x32xf32>
    %282 = arith.negf %281 : vector<2x32xf32>
    %283 = math.exp %282 : vector<2x32xf32>
    %cst_92 = arith.constant 1.000000e+00 : f32
    %284 = vector.broadcast %cst_92 : f32 to vector<2x32xf32>
    %285 = arith.addf %284, %283 : vector<2x32xf32>
    %286 = arith.divf %284, %285 : vector<2x32xf32>
    %287 = arith.mulf %278, %258 : vector<2x32xf32>
    %288 = arith.mulf %272, %280 : vector<2x32xf32>
    %289 = arith.addf %287, %288 : vector<2x32xf32>
    %290 = math.tanh %289 : vector<2x32xf32>
    %291 = arith.mulf %286, %290 : vector<2x32xf32>
    %c5_i32 = arith.constant 5 : i32
    %292 = vector.broadcast %c5_i32 : i32 to vector<2x1xi32>
    %293 = arith.cmpi sgt, %1, %292 : vector<2x1xi32>
    %cst_93 = arith.constant 0.000000e+00 : f32
    %294 = vector.broadcast %cst_93 : f32 to vector<2x32xf32>
    %295 = vector.shape_cast %293 : vector<2x1xi1> to vector<2x1xi1>
    %296 = vector.broadcast %295 : vector<2x1xi1> to vector<2x32xi1>
    %297 = arith.select %296, %291, %294 : vector<2x32xi1>, vector<2x32xf32>
    %c10_94 = arith.constant 10 : index
    %c0_95 = arith.constant 0 : index
    %298 = vector.load %arg12[%c10_94, %c0_95] : memref<12x32xf32, #tpu.memory_space<vmem>>, vector<2x32xf32>
    tpu.vector_store %arg12[%c10_94, %c0_95], %297 {strides = array<i32>} : memref<12x32xf32, #tpu.memory_space<vmem>>, vector<2x32xf32>,
    %c0_96 = arith.constant 0 : index
    %c0_97 = arith.constant 0 : index
    %299 = vector.load %arg12[%c0_96, %c0_97] : memref<12x32xf32, #tpu.memory_space<vmem>>, vector<12x32xf32>
    %c0_98 = arith.constant 0 : index
    %c0_99 = arith.constant 0 : index
    %300 = vector.load %arg6[%c0_98, %c0_99] : memref<32x128xf32, #tpu.memory_space<vmem>>, vector<32x128xf32>
    %cst_100 = arith.constant dense<0.000000e+00> : vector<12x128xf32>
    %301 = tpu.matmul %299, %300, %cst_100 {dimension_numbers = #tpu.dot_dimension_numbers<[1], [0], [0], [1], [0, 0, 1, 1], [], []>} : vector<12x32xf32>, vector<32x128xf32>, vector<12x128xf32> -> vector<12x128xf32>
    %c0_101 = arith.constant 0 : index
    %c0_102 = arith.constant 0 : index
    %302 = vector.load %arg7[%c0_101, %c0_102] : memref<1x128xf32, #tpu.memory_space<vmem>>, vector<1x128xf32>
    %303 = vector.broadcast %302 : vector<1x128xf32> to vector<12x128xf32>
    %304 = arith.addf %301, %303 : vector<12x128xf32>
    %305 = math.tanh %304 : vector<12x128xf32>
    %c0_103 = arith.constant 0 : index
    %c0_104 = arith.constant 0 : index
    %306 = vector.load %arg8[%c0_103, %c0_104] : memref<128x128xf32, #tpu.memory_space<vmem>>, vector<128x128xf32>
    %cst_105 = arith.constant dense<0.000000e+00> : vector<12x128xf32>
    %307 = tpu.matmul %305, %306, %cst_105 {dimension_numbers = #tpu.dot_dimension_numbers<[1], [0], [0], [1], [0, 0, 1, 1], [], []>} : vector<12x128xf32>, vector<128x128xf32>, vector<12x128xf32> -> vector<12x128xf32>
    %c0_106 = arith.constant 0 : index
    %c0_107 = arith.constant 0 : index
    %308 = vector.load %arg9[%c0_106, %c0_107] : memref<1x128xf32, #tpu.memory_space<vmem>>, vector<1x128xf32>
    %309 = vector.broadcast %308 : vector<1x128xf32> to vector<12x128xf32>
    %310 = arith.addf %307, %309 : vector<12x128xf32>
    %311 = vector.extract_strided_slice %310 {offsets = [0, 0], sizes = [2, 128], strides = [1, 1]} : vector<12x128xf32> to vector<2x128xf32>
    %312 = vector.extract_strided_slice %310 {offsets = [2, 0], sizes = [2, 128], strides = [1, 1]} : vector<12x128xf32> to vector<2x128xf32>
    %313 = vector.extract_strided_slice %310 {offsets = [4, 0], sizes = [2, 128], strides = [1, 1]} : vector<12x128xf32> to vector<2x128xf32>
    %314 = vector.extract_strided_slice %310 {offsets = [6, 0], sizes = [2, 128], strides = [1, 1]} : vector<12x128xf32> to vector<2x128xf32>
    %315 = vector.extract_strided_slice %310 {offsets = [8, 0], sizes = [2, 128], strides = [1, 1]} : vector<12x128xf32> to vector<2x128xf32>
    %316 = vector.extract_strided_slice %310 {offsets = [10, 0], sizes = [2, 128], strides = [1, 1]} : vector<12x128xf32> to vector<2x128xf32>
    %317 = arith.maximumf %311, %312 : vector<2x128xf32>
    %318 = arith.maximumf %317, %313 : vector<2x128xf32>
    %319 = arith.maximumf %318, %314 : vector<2x128xf32>
    %320 = arith.maximumf %319, %315 : vector<2x128xf32>
    %321 = arith.maximumf %320, %316 : vector<2x128xf32>
    %322 = arith.subf %311, %321 : vector<2x128xf32>
    %323 = math.exp %322 : vector<2x128xf32>
    %324 = arith.subf %312, %321 : vector<2x128xf32>
    %325 = math.exp %324 : vector<2x128xf32>
    %326 = arith.subf %313, %321 : vector<2x128xf32>
    %327 = math.exp %326 : vector<2x128xf32>
    %328 = arith.subf %314, %321 : vector<2x128xf32>
    %329 = math.exp %328 : vector<2x128xf32>
    %330 = arith.subf %315, %321 : vector<2x128xf32>
    %331 = math.exp %330 : vector<2x128xf32>
    %332 = arith.subf %316, %321 : vector<2x128xf32>
    %333 = math.exp %332 : vector<2x128xf32>
    %334 = arith.addf %323, %325 : vector<2x128xf32>
    %335 = arith.addf %334, %327 : vector<2x128xf32>
    %336 = arith.addf %335, %329 : vector<2x128xf32>
    %337 = arith.addf %336, %331 : vector<2x128xf32>
    %338 = arith.addf %337, %333 : vector<2x128xf32>
    %339 = tpu.reciprocal %338 {approx = true} : vector<2x128xf32> -> vector<2x128xf32>
    %340 = arith.mulf %323, %339 : vector<2x128xf32>
    %341 = arith.mulf %325, %339 : vector<2x128xf32>
    %342 = arith.mulf %327, %339 : vector<2x128xf32>
    %343 = arith.mulf %329, %339 : vector<2x128xf32>
    %344 = arith.mulf %331, %339 : vector<2x128xf32>
    %345 = arith.mulf %333, %339 : vector<2x128xf32>
    %cst_108 = arith.constant 0.000000e+00 : f32
    %346 = vector.broadcast %cst_108 : f32 to vector<2x32xf32>
    %347 = vector.extract_strided_slice %340 {offsets = [0, 0], sizes = [2, 32], strides = [1, 1]} : vector<2x128xf32> to vector<2x32xf32>
    %348 = vector.extract_strided_slice %299 {offsets = [0, 0], sizes = [2, 32], strides = [1, 1]} : vector<12x32xf32> to vector<2x32xf32>
    %349 = arith.mulf %347, %348 : vector<2x32xf32>
    %350 = arith.addf %346, %349 : vector<2x32xf32>
    %351 = vector.extract_strided_slice %341 {offsets = [0, 0], sizes = [2, 32], strides = [1, 1]} : vector<2x128xf32> to vector<2x32xf32>
    %352 = vector.extract_strided_slice %299 {offsets = [2, 0], sizes = [2, 32], strides = [1, 1]} : vector<12x32xf32> to vector<2x32xf32>
    %353 = arith.mulf %351, %352 : vector<2x32xf32>
    %354 = arith.addf %350, %353 : vector<2x32xf32>
    %355 = vector.extract_strided_slice %342 {offsets = [0, 0], sizes = [2, 32], strides = [1, 1]} : vector<2x128xf32> to vector<2x32xf32>
    %356 = vector.extract_strided_slice %299 {offsets = [4, 0], sizes = [2, 32], strides = [1, 1]} : vector<12x32xf32> to vector<2x32xf32>
    %357 = arith.mulf %355, %356 : vector<2x32xf32>
    %358 = arith.addf %354, %357 : vector<2x32xf32>
    %359 = vector.extract_strided_slice %343 {offsets = [0, 0], sizes = [2, 32], strides = [1, 1]} : vector<2x128xf32> to vector<2x32xf32>
    %360 = vector.extract_strided_slice %299 {offsets = [6, 0], sizes = [2, 32], strides = [1, 1]} : vector<12x32xf32> to vector<2x32xf32>
    %361 = arith.mulf %359, %360 : vector<2x32xf32>
    %362 = arith.addf %358, %361 : vector<2x32xf32>
    %363 = vector.extract_strided_slice %344 {offsets = [0, 0], sizes = [2, 32], strides = [1, 1]} : vector<2x128xf32> to vector<2x32xf32>
    %364 = vector.extract_strided_slice %299 {offsets = [8, 0], sizes = [2, 32], strides = [1, 1]} : vector<12x32xf32> to vector<2x32xf32>
    %365 = arith.mulf %363, %364 : vector<2x32xf32>
    %366 = arith.addf %362, %365 : vector<2x32xf32>
    %367 = vector.extract_strided_slice %345 {offsets = [0, 0], sizes = [2, 32], strides = [1, 1]} : vector<2x128xf32> to vector<2x32xf32>
    %368 = vector.extract_strided_slice %299 {offsets = [10, 0], sizes = [2, 32], strides = [1, 1]} : vector<12x32xf32> to vector<2x32xf32>
    %369 = arith.mulf %367, %368 : vector<2x32xf32>
    %370 = arith.addf %366, %369 : vector<2x32xf32>
    %cst_109 = arith.constant 0.000000e+00 : f32
    %371 = vector.broadcast %cst_109 : f32 to vector<2x32xf32>
    %372 = vector.extract_strided_slice %340 {offsets = [0, 32], sizes = [2, 32], strides = [1, 1]} : vector<2x128xf32> to vector<2x32xf32>
    %373 = vector.extract_strided_slice %299 {offsets = [0, 0], sizes = [2, 32], strides = [1, 1]} : vector<12x32xf32> to vector<2x32xf32>
    %374 = arith.mulf %372, %373 : vector<2x32xf32>
    %375 = arith.addf %371, %374 : vector<2x32xf32>
    %376 = vector.extract_strided_slice %341 {offsets = [0, 32], sizes = [2, 32], strides = [1, 1]} : vector<2x128xf32> to vector<2x32xf32>
    %377 = vector.extract_strided_slice %299 {offsets = [2, 0], sizes = [2, 32], strides = [1, 1]} : vector<12x32xf32> to vector<2x32xf32>
    %378 = arith.mulf %376, %377 : vector<2x32xf32>
    %379 = arith.addf %375, %378 : vector<2x32xf32>
    %380 = vector.extract_strided_slice %342 {offsets = [0, 32], sizes = [2, 32], strides = [1, 1]} : vector<2x128xf32> to vector<2x32xf32>
    %381 = vector.extract_strided_slice %299 {offsets = [4, 0], sizes = [2, 32], strides = [1, 1]} : vector<12x32xf32> to vector<2x32xf32>
    %382 = arith.mulf %380, %381 : vector<2x32xf32>
    %383 = arith.addf %379, %382 : vector<2x32xf32>
    %384 = vector.extract_strided_slice %343 {offsets = [0, 32], sizes = [2, 32], strides = [1, 1]} : vector<2x128xf32> to vector<2x32xf32>
    %385 = vector.extract_strided_slice %299 {offsets = [6, 0], sizes = [2, 32], strides = [1, 1]} : vector<12x32xf32> to vector<2x32xf32>
    %386 = arith.mulf %384, %385 : vector<2x32xf32>
    %387 = arith.addf %383, %386 : vector<2x32xf32>
    %388 = vector.extract_strided_slice %344 {offsets = [0, 32], sizes = [2, 32], strides = [1, 1]} : vector<2x128xf32> to vector<2x32xf32>
    %389 = vector.extract_strided_slice %299 {offsets = [8, 0], sizes = [2, 32], strides = [1, 1]} : vector<12x32xf32> to vector<2x32xf32>
    %390 = arith.mulf %388, %389 : vector<2x32xf32>
    %391 = arith.addf %387, %390 : vector<2x32xf32>
    %392 = vector.extract_strided_slice %345 {offsets = [0, 32], sizes = [2, 32], strides = [1, 1]} : vector<2x128xf32> to vector<2x32xf32>
    %393 = vector.extract_strided_slice %299 {offsets = [10, 0], sizes = [2, 32], strides = [1, 1]} : vector<12x32xf32> to vector<2x32xf32>
    %394 = arith.mulf %392, %393 : vector<2x32xf32>
    %395 = arith.addf %391, %394 : vector<2x32xf32>
    %cst_110 = arith.constant 0.000000e+00 : f32
    %396 = vector.broadcast %cst_110 : f32 to vector<2x32xf32>
    %397 = vector.extract_strided_slice %340 {offsets = [0, 64], sizes = [2, 32], strides = [1, 1]} : vector<2x128xf32> to vector<2x32xf32>
    %398 = vector.extract_strided_slice %299 {offsets = [0, 0], sizes = [2, 32], strides = [1, 1]} : vector<12x32xf32> to vector<2x32xf32>
    %399 = arith.mulf %397, %398 : vector<2x32xf32>
    %400 = arith.addf %396, %399 : vector<2x32xf32>
    %401 = vector.extract_strided_slice %341 {offsets = [0, 64], sizes = [2, 32], strides = [1, 1]} : vector<2x128xf32> to vector<2x32xf32>
    %402 = vector.extract_strided_slice %299 {offsets = [2, 0], sizes = [2, 32], strides = [1, 1]} : vector<12x32xf32> to vector<2x32xf32>
    %403 = arith.mulf %401, %402 : vector<2x32xf32>
    %404 = arith.addf %400, %403 : vector<2x32xf32>
    %405 = vector.extract_strided_slice %342 {offsets = [0, 64], sizes = [2, 32], strides = [1, 1]} : vector<2x128xf32> to vector<2x32xf32>
    %406 = vector.extract_strided_slice %299 {offsets = [4, 0], sizes = [2, 32], strides = [1, 1]} : vector<12x32xf32> to vector<2x32xf32>
    %407 = arith.mulf %405, %406 : vector<2x32xf32>
    %408 = arith.addf %404, %407 : vector<2x32xf32>
    %409 = vector.extract_strided_slice %343 {offsets = [0, 64], sizes = [2, 32], strides = [1, 1]} : vector<2x128xf32> to vector<2x32xf32>
    %410 = vector.extract_strided_slice %299 {offsets = [6, 0], sizes = [2, 32], strides = [1, 1]} : vector<12x32xf32> to vector<2x32xf32>
    %411 = arith.mulf %409, %410 : vector<2x32xf32>
    %412 = arith.addf %408, %411 : vector<2x32xf32>
    %413 = vector.extract_strided_slice %344 {offsets = [0, 64], sizes = [2, 32], strides = [1, 1]} : vector<2x128xf32> to vector<2x32xf32>
    %414 = vector.extract_strided_slice %299 {offsets = [8, 0], sizes = [2, 32], strides = [1, 1]} : vector<12x32xf32> to vector<2x32xf32>
    %415 = arith.mulf %413, %414 : vector<2x32xf32>
    %416 = arith.addf %412, %415 : vector<2x32xf32>
    %417 = vector.extract_strided_slice %345 {offsets = [0, 64], sizes = [2, 32], strides = [1, 1]} : vector<2x128xf32> to vector<2x32xf32>
    %418 = vector.extract_strided_slice %299 {offsets = [10, 0], sizes = [2, 32], strides = [1, 1]} : vector<12x32xf32> to vector<2x32xf32>
    %419 = arith.mulf %417, %418 : vector<2x32xf32>
    %420 = arith.addf %416, %419 : vector<2x32xf32>
    %cst_111 = arith.constant 0.000000e+00 : f32
    %421 = vector.broadcast %cst_111 : f32 to vector<2x32xf32>
    %422 = vector.extract_strided_slice %340 {offsets = [0, 96], sizes = [2, 32], strides = [1, 1]} : vector<2x128xf32> to vector<2x32xf32>
    %423 = vector.extract_strided_slice %299 {offsets = [0, 0], sizes = [2, 32], strides = [1, 1]} : vector<12x32xf32> to vector<2x32xf32>
    %424 = arith.mulf %422, %423 : vector<2x32xf32>
    %425 = arith.addf %421, %424 : vector<2x32xf32>
    %426 = vector.extract_strided_slice %341 {offsets = [0, 96], sizes = [2, 32], strides = [1, 1]} : vector<2x128xf32> to vector<2x32xf32>
    %427 = vector.extract_strided_slice %299 {offsets = [2, 0], sizes = [2, 32], strides = [1, 1]} : vector<12x32xf32> to vector<2x32xf32>
    %428 = arith.mulf %426, %427 : vector<2x32xf32>
    %429 = arith.addf %425, %428 : vector<2x32xf32>
    %430 = vector.extract_strided_slice %342 {offsets = [0, 96], sizes = [2, 32], strides = [1, 1]} : vector<2x128xf32> to vector<2x32xf32>
    %431 = vector.extract_strided_slice %299 {offsets = [4, 0], sizes = [2, 32], strides = [1, 1]} : vector<12x32xf32> to vector<2x32xf32>
    %432 = arith.mulf %430, %431 : vector<2x32xf32>
    %433 = arith.addf %429, %432 : vector<2x32xf32>
    %434 = vector.extract_strided_slice %343 {offsets = [0, 96], sizes = [2, 32], strides = [1, 1]} : vector<2x128xf32> to vector<2x32xf32>
    %435 = vector.extract_strided_slice %299 {offsets = [6, 0], sizes = [2, 32], strides = [1, 1]} : vector<12x32xf32> to vector<2x32xf32>
    %436 = arith.mulf %434, %435 : vector<2x32xf32>
    %437 = arith.addf %433, %436 : vector<2x32xf32>
    %438 = vector.extract_strided_slice %344 {offsets = [0, 96], sizes = [2, 32], strides = [1, 1]} : vector<2x128xf32> to vector<2x32xf32>
    %439 = vector.extract_strided_slice %299 {offsets = [8, 0], sizes = [2, 32], strides = [1, 1]} : vector<12x32xf32> to vector<2x32xf32>
    %440 = arith.mulf %438, %439 : vector<2x32xf32>
    %441 = arith.addf %437, %440 : vector<2x32xf32>
    %442 = vector.extract_strided_slice %345 {offsets = [0, 96], sizes = [2, 32], strides = [1, 1]} : vector<2x128xf32> to vector<2x32xf32>
    %443 = vector.extract_strided_slice %299 {offsets = [10, 0], sizes = [2, 32], strides = [1, 1]} : vector<12x32xf32> to vector<2x32xf32>
    %444 = arith.mulf %442, %443 : vector<2x32xf32>
    %445 = arith.addf %441, %444 : vector<2x32xf32>
    %cst_112 = arith.constant 0.000000e+00 : f32
    %446 = vector.broadcast %cst_112 : f32 to vector<2x1xf32>
    %447 = arith.mulf %370, %370 : vector<2x32xf32>
    %cst_113 = arith.constant dense<0.000000e+00> : vector<2xf32>
    %448 = vector.multi_reduction <add>, %447, %cst_113 [1] : vector<2x32xf32> to vector<2xf32>
    %449 = vector.shape_cast %448 : vector<2xf32> to vector<2x1xf32>
    %450 = arith.addf %446, %449 : vector<2x1xf32>
    %451 = arith.mulf %395, %395 : vector<2x32xf32>
    %cst_114 = arith.constant dense<0.000000e+00> : vector<2xf32>
    %452 = vector.multi_reduction <add>, %451, %cst_114 [1] : vector<2x32xf32> to vector<2xf32>
    %453 = vector.shape_cast %452 : vector<2xf32> to vector<2x1xf32>
    %454 = arith.addf %450, %453 : vector<2x1xf32>
    %455 = arith.mulf %420, %420 : vector<2x32xf32>
    %cst_115 = arith.constant dense<0.000000e+00> : vector<2xf32>
    %456 = vector.multi_reduction <add>, %455, %cst_115 [1] : vector<2x32xf32> to vector<2xf32>
    %457 = vector.shape_cast %456 : vector<2xf32> to vector<2x1xf32>
    %458 = arith.addf %454, %457 : vector<2x1xf32>
    %459 = arith.mulf %445, %445 : vector<2x32xf32>
    %cst_116 = arith.constant dense<0.000000e+00> : vector<2xf32>
    %460 = vector.multi_reduction <add>, %459, %cst_116 [1] : vector<2x32xf32> to vector<2xf32>
    %461 = vector.shape_cast %460 : vector<2xf32> to vector<2x1xf32>
    %462 = arith.addf %458, %461 : vector<2x1xf32>
    %cst_117 = arith.constant 1.000000e-24 : f32
    %463 = vector.broadcast %cst_117 : f32 to vector<2x1xf32>
    %464 = arith.maximumf %462, %463 : vector<2x1xf32>
    %465 = math.rsqrt %464 : vector<2x1xf32>
    %466 = vector.broadcast %465 : vector<2x1xf32> to vector<2x32xf32>
    %467 = arith.mulf %370, %466 : vector<2x32xf32>
    %c0_118 = arith.constant 0 : index
    %c0_119 = arith.constant 0 : index
    %468 = vector.load %arg10[%c0_118, %c0_119] : memref<2x128xf32, #tpu.memory_space<vmem>>, vector<2x32xf32>
    tpu.vector_store %arg10[%c0_118, %c0_119], %467 {strides = array<i32>} : memref<2x128xf32, #tpu.memory_space<vmem>>, vector<2x32xf32>,
    %469 = vector.broadcast %465 : vector<2x1xf32> to vector<2x32xf32>
    %470 = arith.mulf %395, %469 : vector<2x32xf32>
    %c0_120 = arith.constant 0 : index
    %c32 = arith.constant 32 : index
    %471 = vector.load %arg10[%c0_120, %c32] : memref<2x128xf32, #tpu.memory_space<vmem>>, vector<2x32xf32>
    tpu.vector_store %arg10[%c0_120, %c32], %470 {strides = array<i32>} : memref<2x128xf32, #tpu.memory_space<vmem>>, vector<2x32xf32>,
    %472 = vector.broadcast %465 : vector<2x1xf32> to vector<2x32xf32>
    %473 = arith.mulf %420, %472 : vector<2x32xf32>
    %c0_121 = arith.constant 0 : index
    %c64 = arith.constant 64 : index
    %474 = vector.load %arg10[%c0_121, %c64] : memref<2x128xf32, #tpu.memory_space<vmem>>, vector<2x32xf32>
    tpu.vector_store %arg10[%c0_121, %c64], %473 {strides = array<i32>} : memref<2x128xf32, #tpu.memory_space<vmem>>, vector<2x32xf32>,
    %475 = vector.broadcast %465 : vector<2x1xf32> to vector<2x32xf32>
    %476 = arith.mulf %445, %475 : vector<2x32xf32>
    %c0_122 = arith.constant 0 : index
    %c96 = arith.constant 96 : index
    %477 = vector.load %arg10[%c0_122, %c96] : memref<2x128xf32, #tpu.memory_space<vmem>>, vector<2x32xf32>
    tpu.vector_store %arg10[%c0_122, %c96], %476 {strides = array<i32>} : memref<2x128xf32, #tpu.memory_space<vmem>>, vector<2x32xf32>,
    return
  }
  func.func @transform_0(%arg0: i32) -> (i32, i32) {
    %c0_i32 = arith.constant 0 : i32
    %c0_i32_0 = arith.constant 0 : i32
    %c0_i32_1 = arith.constant 0 : i32
    return %c0_i32, %c0_i32_0 : i32, i32
  }
  func.func @transform_1(%arg0: i32) -> (i32, i32) {
    %c0_i32 = arith.constant 0 : i32
    %c0_i32_0 = arith.constant 0 : i32
    %c0_i32_1 = arith.constant 0 : i32
    return %c0_i32, %c0_i32_0 : i32, i32
  }
  func.func @transform_2(%arg0: i32) -> (i32, i32) {
    %c0_i32 = arith.constant 0 : i32
    %c0_i32_0 = arith.constant 0 : i32
    %c0_i32_1 = arith.constant 0 : i32
    return %c0_i32, %c0_i32_0 : i32, i32
  }
  func.func @transform_3(%arg0: i32) -> (i32, i32) {
    %c0_i32 = arith.constant 0 : i32
    %c0_i32_0 = arith.constant 0 : i32
    %c0_i32_1 = arith.constant 0 : i32
    return %c0_i32, %c0_i32_0 : i32, i32
  }
  func.func @transform_4(%arg0: i32) -> (i32, i32) {
    %c0_i32 = arith.constant 0 : i32
    %c0_i32_0 = arith.constant 0 : i32
    %c0_i32_1 = arith.constant 0 : i32
    return %c0_i32, %c0_i32_0 : i32, i32
  }
  func.func @transform_5(%arg0: i32) -> (i32, i32) {
    %c0_i32 = arith.constant 0 : i32
    %c0_i32_0 = arith.constant 0 : i32
    %c0_i32_1 = arith.constant 0 : i32
    return %c0_i32, %c0_i32_0 : i32, i32
  }
  func.func @transform_6(%arg0: i32) -> (i32, i32) {
    %c0_i32 = arith.constant 0 : i32
    %c0_i32_0 = arith.constant 0 : i32
    %c0_i32_1 = arith.constant 0 : i32
    return %c0_i32, %c0_i32_0 : i32, i32
  }
  func.func @transform_7(%arg0: i32) -> (i32, i32) {
    %c0_i32 = arith.constant 0 : i32
    %c0_i32_0 = arith.constant 0 : i32
    %c0_i32_1 = arith.constant 0 : i32
    return %c0_i32, %c0_i32_0 : i32, i32
  }
  func.func @transform_8(%arg0: i32) -> (i32, i32) {
    %c0_i32 = arith.constant 0 : i32
    %c0_i32_0 = arith.constant 0 : i32
    %c0_i32_1 = arith.constant 0 : i32
    return %c0_i32, %c0_i32_0 : i32, i32
  }
  func.func @transform_9(%arg0: i32) -> (i32, i32) {
    %c0_i32 = arith.constant 0 : i32
    %c0_i32_0 = arith.constant 0 : i32
    %c0_i32_1 = arith.constant 0 : i32
    return %c0_i32, %c0_i32_0 : i32, i32
  }
}

</mosaic_0001>

<llo_original>
// kernel: tpu_custom_call.1
$region0: #{tpu_custom_call.1}
  #allocation0 [shape = 'u32[]', space=smem, size = 0x4, offset = 0x4, fixed_abs, tag = 'smem constant byte address 0x4 - core index']
  #allocation1 [shape = 'u32[144,128]{1,0:T(1,128)}', space=vmem, size = 0x12000, scoped, tag = 'internal scratch']
  #allocation2 [shape = 'f32[12,24]{1,0:T(8,128)}', space=vmem, size = 0x2000, scoped, tag = 'scratch operand']
  #allocation3 [shape = 'f32[12,32]{1,0:T(8,128)}', space=vmem, size = 0x2000, scoped, tag = 'scratch operand']
  %s0 = inlined_call_operand.hbm [shape: f32[8,16], index: 0, kind: input, shape index: {}]
  %s1 = inlined_call_operand.vmem [shape: s32[2,1], index: 1, kind: input, shape index: {}]
  %s2 = inlined_call_operand.hbm [shape: f32[24,128], index: 2, kind: input, shape index: {}]
  %s3 = inlined_call_operand.vmem [shape: f32[1,128], index: 3, kind: input, shape index: {}]
  %s4 = inlined_call_operand.hbm [shape: f32[32,128], index: 4, kind: input, shape index: {}]
  %s5 = inlined_call_operand.hbm [shape: f32[32,128], index: 5, kind: input, shape index: {}]
  %s6 = inlined_call_operand.vmem [shape: f32[1,128], index: 6, kind: input, shape index: {}]
  %s7 = inlined_call_operand.hbm [shape: f32[128,128], index: 7, kind: input, shape index: {}]
  %s8 = inlined_call_operand.vmem [shape: f32[1,128], index: 8, kind: input, shape index: {}]
  %s9 = inlined_call_operand.hbm [shape: f32[2,128], index: 9, kind: output, shape index: {}]
  %s10 = sld [smem:[#allocation0]]
  $region66: #{tpu_custom_call.1} parent=0
    _
  %s12 = ssub.s32 1, %s10
  %s13 = scalar_select 0, %s12, %s10
  $region1: #{tpu_custom_call.1} parent=0
    #allocation4 [shape = 'u8[4096]{0}', space=vmem, size = 0x1000, scoped, tag = 'input window, operand 0, single buffered']
    #allocation5 [shape = 's32[1]{0}', space=sflag, size = 0x4, scoped, tag = 'scoped memory for tpu_custom_call.1']
    #allocation6 [shape = 's32[1]{0}', space=sflag, size = 0x4, scoped, tag = 'scoped memory for tpu_custom_call.1']
    #allocation7 [shape = 'u8[12288]{0}', space=vmem, size = 0x3000, scoped, tag = 'input window, operand 2, single buffered']
    #allocation8 [shape = 's32[1]{0}', space=sflag, size = 0x4, scoped, tag = 'scoped memory for tpu_custom_call.1']
    #allocation9 [shape = 'u8[16384]{0}', space=vmem, size = 0x4000, scoped, tag = 'input window, operand 4, single buffered']
    #allocation10 [shape = 'u8[16384]{0}', space=vmem, size = 0x4000, scoped, tag = 'input window, operand 5, single buffered']
    #allocation11 [shape = 's32[1]{0}', space=sflag, size = 0x4, scoped, tag = 'scoped memory for tpu_custom_call.1']
    #allocation12 [shape = 'u8[65536]{0}', space=vmem, size = 0x10000, scoped, tag = 'input window, operand 7, single buffered']
    #allocation13 [shape = 'u8[1024]{0}', space=vmem, size = 0x400, scoped, tag = 'output window, operand 0, single buffered']
    %14 = vsyncpa [#allocation5], 0
    %15 = vsyncpa [#allocation8], 0
    %16 = vsyncpa [#allocation11], 0
    %17 = vsyncpa [#allocation6], 0
    // Predicated region
    $region2: #{tpu_custom_call.1} parent=1 // pred_check
      _
    $region3: #{tpu_custom_call.1} parent=1 // pred_check_branch
      %19 = sbr.rel (0) target = $region5
    $region4: #{tpu_custom_call.1} parent=1 // pred_region
      %s21 = ssub.s32 128, 128
      %22 = vsyncadd [#allocation5], %s21
      %s24 = sshll.u32 [#allocation4], 4
      %s25 = int_to_ptr.vmem [resolvable:$true] %s24
      %27 = dma.hbm_to_vmem [thread:$0]  %s0, 128, %s25, [#allocation5]
    $region5: #{tpu_custom_call.1} parent=1 // pred_fallthru
      _
    // Predicated region
    $region6: #{tpu_custom_call.1} parent=1 // pred_check
      _
    $region7: #{tpu_custom_call.1} parent=1 // pred_check_branch
      %29 = sbr.rel (0) target = $region9
    $region8: #{tpu_custom_call.1} parent=1 // pred_region
      _
    $region9: #{tpu_custom_call.1} parent=1 // pred_fallthru
      _
    // Predicated region
    $region10: #{tpu_custom_call.1} parent=1 // pred_check
      _
    $region11: #{tpu_custom_call.1} parent=1 // pred_check_branch
      %31 = sbr.rel (0) target = $region13
    $region12: #{tpu_custom_call.1} parent=1 // pred_region
      %s33 = ssub.s32 384, 384
      %34 = vsyncadd [#allocation8], %s33
      %s35 = sshll.u32 [#allocation7], 4
      %s36 = int_to_ptr.vmem [resolvable:$true] %s35
      %41 = dma.hbm_to_vmem [thread:$0]  %s2, 384, %s36, [#allocation8], 128, 128, 8
    $region13: #{tpu_custom_call.1} parent=1 // pred_fallthru
      _
    // Predicated region
    $region14: #{tpu_custom_call.1} parent=1 // pred_check
      _
    $region15: #{tpu_custom_call.1} parent=1 // pred_check_branch
      %43 = sbr.rel (0) target = $region17
    $region16: #{tpu_custom_call.1} parent=1 // pred_region
      _
    $region17: #{tpu_custom_call.1} parent=1 // pred_fallthru
      _
    // Predicated region
    $region18: #{tpu_custom_call.1} parent=1 // pred_check
      _
    $region19: #{tpu_custom_call.1} parent=1 // pred_check_branch
      %45 = sbr.rel (0) target = $region21
    $region20: #{tpu_custom_call.1} parent=1 // pred_region
      %s47 = ssub.s32 512, 512
      %48 = vsyncadd [#allocation8], %s47
      %s49 = sshll.u32 [#allocation9], 4
      %s50 = int_to_ptr.vmem [resolvable:$true] %s49
      %55 = dma.hbm_to_vmem [thread:$0]  %s4, 512, %s50, [#allocation8], 128, 128, 8
    $region21: #{tpu_custom_call.1} parent=1 // pred_fallthru
      _
    // Predicated region
    $region22: #{tpu_custom_call.1} parent=1 // pred_check
      _
    $region23: #{tpu_custom_call.1} parent=1 // pred_check_branch
      %57 = sbr.rel (0) target = $region25
    $region24: #{tpu_custom_call.1} parent=1 // pred_region
      %s59 = ssub.s32 512, 512
      %60 = vsyncadd [#allocation11], %s59
      %s61 = sshll.u32 [#allocation10], 4
      %s62 = int_to_ptr.vmem [resolvable:$true] %s61
      %67 = dma.hbm_to_vmem [thread:$0]  %s5, 512, %s62, [#allocation11], 128, 128, 8
    $region25: #{tpu_custom_call.1} parent=1 // pred_fallthru
      _
    // Predicated region
    $region26: #{tpu_custom_call.1} parent=1 // pred_check
      _
    $region27: #{tpu_custom_call.1} parent=1 // pred_check_branch
      %69 = sbr.rel (0) target = $region29
    $region28: #{tpu_custom_call.1} parent=1 // pred_region
      _
    $region29: #{tpu_custom_call.1} parent=1 // pred_fallthru
      _
    // Predicated region
    $region30: #{tpu_custom_call.1} parent=1 // pred_check
      _
    $region31: #{tpu_custom_call.1} parent=1 // pred_check_branch
      %71 = sbr.rel (0) target = $region33
    $region32: #{tpu_custom_call.1} parent=1 // pred_region
      %s73 = ssub.s32 2048, 2048
      %74 = vsyncadd [#allocation11], %s73
      %s75 = sshll.u32 [#allocation12], 4
      %s76 = int_to_ptr.vmem [resolvable:$true] %s75
      %81 = dma.hbm_to_vmem [thread:$0]  %s7, 2048, %s76, [#allocation11], 128, 128, 8
    $region33: #{tpu_custom_call.1} parent=1 // pred_fallthru
      _
    // Predicated region
    $region34: #{tpu_custom_call.1} parent=1 // pred_check
      _
    $region35: #{tpu_custom_call.1} parent=1 // pred_check_branch
      %83 = sbr.rel (0) target = $region37
    $region36: #{tpu_custom_call.1} parent=1 // pred_region
      _
    $region37: #{tpu_custom_call.1} parent=1 // pred_fallthru
      _
    // Predicated region
    $region38: #{tpu_custom_call.1} parent=1 // pred_check
      _
    $region39: #{tpu_custom_call.1} parent=1 // pred_check_branch
      %85 = sbr.rel (0) target = $region41
    $region40: #{tpu_custom_call.1} parent=1 // pred_region
      %86 = dma.done [#allocation5], 128
    $region41: #{tpu_custom_call.1} parent=1 // pred_fallthru
      _
    // Predicated region
    $region42: #{tpu_custom_call.1} parent=1 // pred_check
      _
    $region43: #{tpu_custom_call.1} parent=1 // pred_check_branch
      %88 = sbr.rel (0) target = $region45
    $region44: #{tpu_custom_call.1} parent=1 // pred_region
      %89 = dma.done [#allocation8], 384
    $region45: #{tpu_custom_call.1} parent=1 // pred_fallthru
      _
    // Predicated region
    $region46: #{tpu_custom_call.1} parent=1 // pred_check
      _
    $region47: #{tpu_custom_call.1} parent=1 // pred_check_branch
      %91 = sbr.rel (0) target = $region49
    $region48: #{tpu_custom_call.1} parent=1 // pred_region
      %92 = dma.done [#allocation8], 512
    $region49: #{tpu_custom_call.1} parent=1 // pred_fallthru
      _
    // Predicated region
    $region50: #{tpu_custom_call.1} parent=1 // pred_check
      _
    $region51: #{tpu_custom_call.1} parent=1 // pred_check_branch
      %94 = sbr.rel (0) target = $region53
    $region52: #{tpu_custom_call.1} parent=1 // pred_region
      %95 = dma.done [#allocation11], 512
    $region53: #{tpu_custom_call.1} parent=1 // pred_fallthru
      _
    // Predicated region
    $region54: #{tpu_custom_call.1} parent=1 // pred_check
      _
    $region55: #{tpu_custom_call.1} parent=1 // pred_check_branch
      %97 = sbr.rel (0) target = $region57
    $region56: #{tpu_custom_call.1} parent=1 // pred_region
      %98 = dma.done [#allocation11], 2048
    $region57: #{tpu_custom_call.1} parent=1 // pred_fallthru
      _
    %v99 = vld [vmem:[#allocation4] sm:$0xff]
    %v100 = vld [vmem:[%s1] sm:$0x3]
    %vm101 = vcmask 41984
    %102 = vst.msk [vmem:[#allocation2] sm:$0x3] %vm101, %v99
    %104 = vrot.lane.b32.xlu0 %v99, 6
    %v105 = vpop.permute.xlu0 %104
    %vm107 = vcmask 93234
    %108 = vst.msk [vmem:[#allocation2 - $0x2] sm:$0xc] %vm107, %v105
    %109 = vrot.lane.b32.xlu0 %v99, 12
    %v110 = vpop.permute.xlu0 %109
    %vm112 = vcmask 144484
    %113 = vst.msk [vmem:[#allocation2 - $0x4] sm:$0x30] %vm112, %v110
    %114 = vrot.lane.b32.xlu0 %v99, 18
    %v115 = vpop.permute.xlu0 %114
    %vm117 = vcmask 195734
    %118 = vst.msk [vmem:[#allocation2 - $0x6] sm:$0xc0] %vm117, %v115
    %119 = vrot.lane.b32.xlu0 %v99, 126
    %v120 = vpop.permute.xlu0 %119
    %122 = vst.msk [vmem:[#allocation2 + $0x2] sm:$0x3] %vm101, %v120
    %123 = vrot.lane.b32.xlu0 %v99, 4
    %v124 = vpop.permute.xlu0 %123
    %126 = vst.msk [vmem:[#allocation2] sm:$0xc] %vm107, %v124
    %127 = vrot.lane.b32.xlu0 %v99, 10
    %v128 = vpop.permute.xlu0 %127
    %130 = vst.msk [vmem:[#allocation2 - $0x2] sm:$0x30] %vm112, %v128
    %131 = vrot.lane.b32.xlu0 %v99, 16
    %v132 = vpop.permute.xlu0 %131
    %134 = vst.msk [vmem:[#allocation2 - $0x4] sm:$0xc0] %vm117, %v132
    %135 = vrot.lane.b32.xlu0 %v99, 124
    %v136 = vpop.permute.xlu0 %135
    %138 = vst.msk [vmem:[#allocation2 + $0x4] sm:$0x3] %vm101, %v136
    %139 = vrot.lane.b32.xlu0 %v99, 2
    %v140 = vpop.permute.xlu0 %139
    %142 = vst.msk [vmem:[#allocation2 + $0x2] sm:$0xc] %vm107, %v140
    %143 = vrot.lane.b32.xlu0 %v99, 8
    %v144 = vpop.permute.xlu0 %143
    %146 = vst.msk [vmem:[#allocation2] sm:$0x30] %vm112, %v144
    %147 = vrot.lane.b32.xlu0 %v99, 14
    %v148 = vpop.permute.xlu0 %147
    %150 = vst.msk [vmem:[#allocation2 - $0x2] sm:$0xc0] %vm117, %v148
    %151 = vrot.lane.b32.xlu0 %v99, 122
    %v152 = vpop.permute.xlu0 %151
    %154 = vst.msk [vmem:[#allocation2 + $0x6] sm:$0x3] %vm101, %v152
    %155 = vst.msk [vmem:[#allocation2 + $0x4] sm:$0xc] %vm107, %v99
    %156 = vst.msk [vmem:[#allocation2 + $0x2] sm:$0x30] %vm112, %v105
    %157 = vst.msk [vmem:[#allocation2] sm:$0xc0] %vm117, %v110
    %158 = vrot.lane.b32.xlu0 %v99, 120
    %v159 = vpop.permute.xlu0 %158
    %161 = vst.msk [vmem:[#allocation2 + $0x8] sm:$0x3] %vm101, %v159
    %162 = vst.msk [vmem:[#allocation2 + $0x6] sm:$0xc] %vm107, %v120
    %163 = vst.msk [vmem:[#allocation2 + $0x4] sm:$0x30] %vm112, %v124
    %164 = vst.msk [vmem:[#allocation2 + $0x2] sm:$0xc0] %vm117, %v128
    %165 = vrot.lane.b32.xlu0 %v99, 118
    %v166 = vpop.permute.xlu0 %165
    %168 = vst.msk [vmem:[#allocation2 + $0xa] sm:$0x3] %vm101, %v166
    %169 = vst.msk [vmem:[#allocation2 + $0x8] sm:$0xc] %vm107, %v136
    %170 = vst.msk [vmem:[#allocation2 + $0x6] sm:$0x30] %vm112, %v140
    %171 = vst.msk [vmem:[#allocation2 + $0x4] sm:$0xc0] %vm117, %v144
    %v172 = vld [vmem:[#allocation2] sm:$0xff]
    %v173 = vld [vmem:[#allocation2 + $0x8] sm:$0xf]
    %v174 = vld [vmem:[#allocation7] sm:$0xff]
    %v175 = vld [vmem:[#allocation7 + $0x8] sm:$0xff]
    %v176 = vld [vmem:[#allocation7 + $0x10] sm:$0xff]
    %v177 = vld [vmem:[%s3] sm:$0x1]
    %v179 = vlaneseq
    %v180 = vshrl.u32 %v179, 7
    %v181 = vsub.s32 0, %v180
    %v182 = vrot.slane %v177, %v181
    %vm184 = vcmask 195584
    %v186 = vsel %vm184, %v172, 0
    %v189 = vsel %vm184, %v173, 0
    %191 = vmatprep.subr.mxu0 0.0
    %192 = vmatpush1.msra.mxu0 %v174
    %193 = vmatprep.subr.mxu0 0.0
    %194 = vmatpush1.msra.mxu0 %v175
    %195 = vmatprep.subr.mxu0 0.0
    %196 = vmatpush1.msra.mxu0 %v176
    %197 = vmatprep.subr.mxu0 0.0
    %198 = vmatpush1.msra.mxu0 0.0
    %199 = vmatprep.subr.mxu0 0.0
    %200 = vmatpush1.msra.mxu0 0.0
    %201 = vmatprep.subr.mxu0 0.0
    %202 = vmatpush1.msra.mxu0 0.0
    %203 = vmatprep.subr.mxu0 0.0
    %204 = vmatpush1.msra.mxu0 0.0
    %205 = vmatprep.subr.mxu0 0.0
    %206 = vmatpush1.msra.mxu0 0.0
    %207 = vmatprep.subr.mxu0 0.0
    %208 = vmatpush1.msra.mxu0 0.0
    %209 = vmatprep.subr.mxu0 0.0
    %210 = vmatpush1.msra.mxu0 0.0
    %211 = vmatprep.subr.mxu0 0.0
    %212 = vmatpush1.msra.mxu0 0.0
    %213 = vmatprep.subr.mxu0 0.0
    %214 = vmatpush1.msra.mxu0 0.0
    %215 = vmatprep.subr.mxu0 0.0
    %216 = vmatpush1.msra.mxu0 0.0
    %217 = vmatprep.subr.mxu0 0.0
    %218 = vmatpush1.msra.mxu0 0.0
    %219 = vmatprep.subr.mxu0 0.0
    %220 = vmatpush1.msra.mxu0 0.0
    %221 = vmatprep.subr.mxu0 0.0
    %222 = vmatpush1.msra.mxu0 0.0
    %223 = vmatprep.subr.mxu0 0.0
    %224 = vmatpush1.msra.mxu0 0.0
    %225 = vmatprep.subr.mxu0 0.0
    %226 = vmatpush1.msra.mxu0 0.0
    %227 = vmatprep.subr.mxu0 0.0
    %228 = vmatpush1.msra.mxu0 0.0
    %229 = vmatprep.subr.mxu0 0.0
    %230 = vmatpush1.msra.mxu0 0.0
    %231 = vmatprep.subr.mxu0 0.0
    %232 = vmatpush1.msra.mxu0 0.0
    %233 = vmatprep.subr.mxu0 0.0
    %234 = vmatpush1.msra.mxu0 0.0
    %235 = vmatprep.subr.mxu0 0.0
    %236 = vmatpush1.msra.mxu0 0.0
    %237 = vmatprep.subr.mxu0 0.0
    %238 = vmatpush1.msra.mxu0 0.0
    %239 = vmatprep.subr.mxu0 0.0
    %240 = vmatpush1.msra.mxu0 0.0
    %241 = vmatprep.subr.mxu0 0.0
    %242 = vmatpush1.msra.mxu0 0.0
    %243 = vmatprep.subr.mxu0 0.0
    %244 = vmatpush1.msra.mxu0 0.0
    %245 = vmatprep.subr.mxu0 0.0
    %246 = vmatpush1.msra.mxu0 0.0
    %247 = vmatprep.subr.mxu0 0.0
    %248 = vmatpush1.msra.mxu0 0.0
    %249 = vmatprep.subr.mxu0 0.0
    %250 = vmatpush1.msra.mxu0 0.0
    %251 = vmatprep.subr.mxu0 0.0
    %252 = vmatpush1.msra.mxu0 0.0
    %253 = vmatprep.subr.mxu0 0.0
    %254 = vmatpush1.msra.mxu0 0.0
    %255 = vmatprep.mubr.f32.mxu0 0.0
    %256 = vmatmul.mubr.f32.gmra.mrb[0].mxu0 %v186
    %v257 = vpop.f32.mrb[0].mxu0
    %v258 = vadd.f32 %v182, %v257
    %v259 = vpop.f32.mrb[0].mxu0
    %260 = vmatprep.mubr.f32.mxu0 0.0
    %261 = vmatmul.mubr.f32.gmra.mrb[0].mxu0 %v189
    %v262 = vpop.f32.mrb[0].mxu0
    %v263 = vadd.f32 %v182, %v262
    %v264 = vpop.f32.mrb[0].mxu0
    %265 = vdwg.mxu0
    %v266 = vld [vmem:[#allocation9] sm:$0xff]
    %v267 = vld [vmem:[#allocation9 + $0x8] sm:$0xff]
    %v268 = vld [vmem:[#allocation9 + $0x10] sm:$0xff]
    %v269 = vld [vmem:[#allocation9 + $0x18] sm:$0xff]
    %vm270 = vcmask 261120
    %v272 = vsel %vm270, 0.0, 0
    %274 = vmatprep.subr.mxu0 0.0
    %275 = vmatpush1.msra.mxu0 %v266
    %276 = vmatprep.subr.mxu0 0.0
    %277 = vmatpush1.msra.mxu0 %v267
    %278 = vmatprep.subr.mxu0 0.0
    %279 = vmatpush1.msra.mxu0 %v268
    %280 = vmatprep.subr.mxu0 0.0
    %281 = vmatpush1.msra.mxu0 %v269
    %282 = vmatprep.subr.mxu0 0.0
    %283 = vmatpush1.msra.mxu0 0.0
    %284 = vmatprep.subr.mxu0 0.0
    %285 = vmatpush1.msra.mxu0 0.0
    %286 = vmatprep.subr.mxu0 0.0
    %287 = vmatpush1.msra.mxu0 0.0
    %288 = vmatprep.subr.mxu0 0.0
    %289 = vmatpush1.msra.mxu0 0.0
    %290 = vmatprep.subr.mxu0 0.0
    %291 = vmatpush1.msra.mxu0 0.0
    %292 = vmatprep.subr.mxu0 0.0
    %293 = vmatpush1.msra.mxu0 0.0
    %294 = vmatprep.subr.mxu0 0.0
    %295 = vmatpush1.msra.mxu0 0.0
    %296 = vmatprep.subr.mxu0 0.0
    %297 = vmatpush1.msra.mxu0 0.0
    %298 = vmatprep.subr.mxu0 0.0
    %299 = vmatpush1.msra.mxu0 0.0
    %300 = vmatprep.subr.mxu0 0.0
    %301 = vmatpush1.msra.mxu0 0.0
    %302 = vmatprep.subr.mxu0 0.0
    %303 = vmatpush1.msra.mxu0 0.0
    %304 = vmatprep.subr.mxu0 0.0
    %305 = vmatpush1.msra.mxu0 0.0
    %306 = vmatprep.subr.mxu0 0.0
    %307 = vmatpush1.msra.mxu0 0.0
    %308 = vmatprep.subr.mxu0 0.0
    %309 = vmatpush1.msra.mxu0 0.0
    %310 = vmatprep.subr.mxu0 0.0
    %311 = vmatpush1.msra.mxu0 0.0
    %312 = vmatprep.subr.mxu0 0.0
    %313 = vmatpush1.msra.mxu0 0.0
    %314 = vmatprep.subr.mxu0 0.0
    %315 = vmatpush1.msra.mxu0 0.0
    %316 = vmatprep.subr.mxu0 0.0
    %317 = vmatpush1.msra.mxu0 0.0
    %318 = vmatprep.subr.mxu0 0.0
    %319 = vmatpush1.msra.mxu0 0.0
    %320 = vmatprep.subr.mxu0 0.0
    %321 = vmatpush1.msra.mxu0 0.0
    %322 = vmatprep.subr.mxu0 0.0
    %323 = vmatpush1.msra.mxu0 0.0
    %324 = vmatprep.subr.mxu0 0.0
    %325 = vmatpush1.msra.mxu0 0.0
    %326 = vmatprep.subr.mxu0 0.0
    %327 = vmatpush1.msra.mxu0 0.0
    %328 = vmatprep.subr.mxu0 0.0
    %329 = vmatpush1.msra.mxu0 0.0
    %330 = vmatprep.subr.mxu0 0.0
    %331 = vmatpush1.msra.mxu0 0.0
    %332 = vmatprep.subr.mxu0 0.0
    %333 = vmatpush1.msra.mxu0 0.0
    %334 = vmatprep.subr.mxu0 0.0
    %335 = vmatpush1.msra.mxu0 0.0
    %336 = vmatprep.subr.mxu0 0.0
    %337 = vmatpush1.msra.mxu0 0.0
    %338 = vmatprep.mubr.f32.mxu0 0.0
    %339 = vmatmul.mubr.f32.gmra.mrb[0].mxu0 %v272
    %v340 = vpop.f32.mrb[0].mxu0
    %v341 = vadd.f32 0.0, %v340
    %v342 = vpop.f32.mrb[0].mxu0
    %343 = vdwg.mxu0
    %v344 = vadd.f32 %v258, %v341
    %v345 = vxor.u32 %v344, 2147483648
    %v346 = vmul.f32 %v345, 1.442695
    %v347 = vpow.pop %v346
    %v348 = vadd.f32 %v347, 1.0
    %v349 = vrcp.pop %v348
    %v350 = vmul.f32 1.0, %v349
    %v351 = vtanh.pop %v344
    %v352 = vmul.f32 %v350, 0.0
    %354 = vrot.lane.b32.xlu0 %v351, 64
    %v355 = vpop.permute.xlu0 %354
    %v357 = vmul.f32 %v350, %v355
    %359 = vrot.lane.b32.xlu0 %v357, 32
    %v360 = vpop.permute.xlu0 %359
    %v362 = vadd.f32 %v352, %v360
    %v363 = vtanh.pop %v362
    %365 = vrot.lane.b32.xlu0 %v363, 64
    %v366 = vpop.permute.xlu0 %365
    %v368 = vmul.f32 %v350, %v366
    %vm369 = vcmp.gt.s32.totalorder %v100, 0
    %v370 = vsel %vm369, 1, 0
    %371 = vset.pattern.permute.xlu0 0
    %372 = vperm.xlu0 %371, %v370
    %v373 = vpop.permute.xlu0 %372
    %vm374 = vcmp.eq.s32.totalorder %v373, 1
    %v375 = vsel %vm374, %v368, 0.0
    %v376 = vsel %vm374, %v362, 0.0
    %378 = vrot.lane.b32.xlu0 %v375, 32
    %v379 = vpop.permute.xlu0 %378
    %vm381 = vcmask 254976
    %382 = vst.msk [vmem:[#allocation3] sm:$0x3] %vm381, %v379
    %v383 = vsel %vm270, %v379, 0
    %385 = vmatprep.subr.mxu0 0.0
    %386 = vmatpush1.msra.mxu0 %v266
    %387 = vmatprep.subr.mxu0 0.0
    %388 = vmatpush1.msra.mxu0 %v267
    %389 = vmatprep.subr.mxu0 0.0
    %390 = vmatpush1.msra.mxu0 %v268
    %391 = vmatprep.subr.mxu0 0.0
    %392 = vmatpush1.msra.mxu0 %v269
    %393 = vmatprep.subr.mxu0 0.0
    %394 = vmatpush1.msra.mxu0 0.0
    %395 = vmatprep.subr.mxu0 0.0
    %396 = vmatpush1.msra.mxu0 0.0
    %397 = vmatprep.subr.mxu0 0.0
    %398 = vmatpush1.msra.mxu0 0.0
    %399 = vmatprep.subr.mxu0 0.0
    %400 = vmatpush1.msra.mxu0 0.0
    %401 = vmatprep.subr.mxu0 0.0
    %402 = vmatpush1.msra.mxu0 0.0
    %403 = vmatprep.subr.mxu0 0.0
    %404 = vmatpush1.msra.mxu0 0.0
    %405 = vmatprep.subr.mxu0 0.0
    %406 = vmatpush1.msra.mxu0 0.0
    %407 = vmatprep.subr.mxu0 0.0
    %408 = vmatpush1.msra.mxu0 0.0
    %409 = vmatprep.subr.mxu0 0.0
    %410 = vmatpush1.msra.mxu0 0.0
    %411 = vmatprep.subr.mxu0 0.0
    %412 = vmatpush1.msra.mxu0 0.0
    %413 = vmatprep.subr.mxu0 0.0
    %414 = vmatpush1.msra.mxu0 0.0
    %415 = vmatprep.subr.mxu0 0.0
    %416 = vmatpush1.msra.mxu0 0.0
    %417 = vmatprep.subr.mxu0 0.0
    %418 = vmatpush1.msra.mxu0 0.0
    %419 = vmatprep.subr.mxu0 0.0
    %420 = vmatpush1.msra.mxu0 0.0
    %421 = vmatprep.subr.mxu0 0.0
    %422 = vmatpush1.msra.mxu0 0.0
    %423 = vmatprep.subr.mxu0 0.0
    %424 = vmatpush1.msra.mxu0 0.0
    %425 = vmatprep.subr.mxu0 0.0
    %426 = vmatpush1.msra.mxu0 0.0
    %427 = vmatprep.subr.mxu0 0.0
    %428 = vmatpush1.msra.mxu0 0.0
    %429 = vmatprep.subr.mxu0 0.0
    %430 = vmatpush1.msra.mxu0 0.0
    %431 = vmatprep.subr.mxu0 0.0
    %432 = vmatpush1.msra.mxu0 0.0
    %433 = vmatprep.subr.mxu0 0.0
    %434 = vmatpush1.msra.mxu0 0.0
    %435 = vmatprep.subr.mxu0 0.0
    %436 = vmatpush1.msra.mxu0 0.0
    %437 = vmatprep.subr.mxu0 0.0
    %438 = vmatpush1.msra.mxu0 0.0
    %439 = vmatprep.subr.mxu0 0.0
    %440 = vmatpush1.msra.mxu0 0.0
    %441 = vmatprep.subr.mxu0 0.0
    %442 = vmatpush1.msra.mxu0 0.0
    %443 = vmatprep.subr.mxu0 0.0
    %444 = vmatpush1.msra.mxu0 0.0
    %445 = vmatprep.subr.mxu0 0.0
    %446 = vmatpush1.msra.mxu0 0.0
    %447 = vmatprep.subr.mxu0 0.0
    %448 = vmatpush1.msra.mxu0 0.0
    %449 = vmatprep.mubr.f32.mxu0 0.0
    %450 = vmatmul.mubr.f32.gmra.mrb[0].mxu0 %v383
    %v451 = vpop.f32.mrb[0].mxu0
    %v452 = vadd.f32 0.0, %v451
    %v453 = vpop.f32.mrb[0].mxu0
    %454 = vdwg.mxu0
    %v456 = vrot.slane %v452, 6
    %v458 = vadd.f32 %v258, %v456
    %v459 = vxor.u32 %v458, 2147483648
    %v460 = vmul.f32 %v459, 1.442695
    %v461 = vpow.pop %v460
    %v462 = vadd.f32 %v461, 1.0
    %v463 = vrcp.pop %v462
    %v464 = vmul.f32 1.0, %v463
    %v465 = vtanh.pop %v458
    %v467 = vrot.slane %v376, 6
    %v469 = vmul.f32 %v464, %v467
    %471 = vrot.lane.b32.xlu0 %v465, 64
    %v472 = vpop.permute.xlu0 %471
    %v474 = vmul.f32 %v464, %v472
    %476 = vrot.lane.b32.xlu0 %v474, 32
    %v477 = vpop.permute.xlu0 %476
    %v479 = vadd.f32 %v469, %v477
    %v480 = vtanh.pop %v479
    %482 = vrot.lane.b32.xlu0 %v480, 64
    %v483 = vpop.permute.xlu0 %482
    %v485 = vmul.f32 %v464, %v483
    %vm486 = vcmp.gt.s32.totalorder %v100, 1
    %v487 = vsel %vm486, 1, 0
    %488 = vset.pattern.permute.xlu0 0
    %489 = vperm.xlu0 %488, %v487
    %v490 = vpop.permute.xlu0 %489
    %vm491 = vcmp.eq.s32.totalorder %v490, 1
    %v493 = vrot.slane %v485, 2
    %494 = vrot.lane.b32.xlu0 %v493, 32
    %v495 = vpop.permute.xlu0 %494
    %v497 = vsel %vm491, %v495, %v379
    %v499 = vrot.slane %v479, 2
    %500 = vrot.lane.b32.xlu0 %v499, 96
    %v501 = vpop.permute.xlu0 %500
    %503 = vrot.lane.b32.xlu0 %v376, 96
    %v504 = vpop.permute.xlu0 %503
    %v506 = vsel %vm491, %v501, %v504
    %v507 = vsel %vm491, %v495, 0.0
    %508 = vst.msk [vmem:[#allocation3 + $0x2] sm:$0x3] %vm381, %v507
    %v510 = vsel %vm270, %v497, 0
    %512 = vmatprep.subr.mxu0 0.0
    %513 = vmatpush1.msra.mxu0 %v266
    %514 = vmatprep.subr.mxu0 0.0
    %515 = vmatpush1.msra.mxu0 %v267
    %516 = vmatprep.subr.mxu0 0.0
    %517 = vmatpush1.msra.mxu0 %v268
    %518 = vmatprep.subr.mxu0 0.0
    %519 = vmatpush1.msra.mxu0 %v269
    %520 = vmatprep.subr.mxu0 0.0
    %521 = vmatpush1.msra.mxu0 0.0
    %522 = vmatprep.subr.mxu0 0.0
    %523 = vmatpush1.msra.mxu0 0.0
    %524 = vmatprep.subr.mxu0 0.0
    %525 = vmatpush1.msra.mxu0 0.0
    %526 = vmatprep.subr.mxu0 0.0
    %527 = vmatpush1.msra.mxu0 0.0
    %528 = vmatprep.subr.mxu0 0.0
    %529 = vmatpush1.msra.mxu0 0.0
    %530 = vmatprep.subr.mxu0 0.0
    %531 = vmatpush1.msra.mxu0 0.0
    %532 = vmatprep.subr.mxu0 0.0
    %533 = vmatpush1.msra.mxu0 0.0
    %534 = vmatprep.subr.mxu0 0.0
    %535 = vmatpush1.msra.mxu0 0.0
    %536 = vmatprep.subr.mxu0 0.0
    %537 = vmatpush1.msra.mxu0 0.0
    %538 = vmatprep.subr.mxu0 0.0
    %539 = vmatpush1.msra.mxu0 0.0
    %540 = vmatprep.subr.mxu0 0.0
    %541 = vmatpush1.msra.mxu0 0.0
    %542 = vmatprep.subr.mxu0 0.0
    %543 = vmatpush1.msra.mxu0 0.0
    %544 = vmatprep.subr.mxu0 0.0
    %545 = vmatpush1.msra.mxu0 0.0
    %546 = vmatprep.subr.mxu0 0.0
    %547 = vmatpush1.msra.mxu0 0.0
    %548 = vmatprep.subr.mxu0 0.0
    %549 = vmatpush1.msra.mxu0 0.0
    %550 = vmatprep.subr.mxu0 0.0
    %551 = vmatpush1.msra.mxu0 0.0
    %552 = vmatprep.subr.mxu0 0.0
    %553 = vmatpush1.msra.mxu0 0.0
    %554 = vmatprep.subr.mxu0 0.0
    %555 = vmatpush1.msra.mxu0 0.0
    %556 = vmatprep.subr.mxu0 0.0
    %557 = vmatpush1.msra.mxu0 0.0
    %558 = vmatprep.subr.mxu0 0.0
    %559 = vmatpush1.msra.mxu0 0.0
    %560 = vmatprep.subr.mxu0 0.0
    %561 = vmatpush1.msra.mxu0 0.0
    %562 = vmatprep.subr.mxu0 0.0
    %563 = vmatpush1.msra.mxu0 0.0
    %564 = vmatprep.subr.mxu0 0.0
    %565 = vmatpush1.msra.mxu0 0.0
    %566 = vmatprep.subr.mxu0 0.0
    %567 = vmatpush1.msra.mxu0 0.0
    %568 = vmatprep.subr.mxu0 0.0
    %569 = vmatpush1.msra.mxu0 0.0
    %570 = vmatprep.subr.mxu0 0.0
    %571 = vmatpush1.msra.mxu0 0.0
    %572 = vmatprep.subr.mxu0 0.0
    %573 = vmatpush1.msra.mxu0 0.0
    %574 = vmatprep.subr.mxu0 0.0
    %575 = vmatpush1.msra.mxu0 0.0
    %576 = vmatprep.mubr.f32.mxu0 0.0
    %577 = vmatmul.mubr.f32.gmra.mrb[0].mxu0 %v510
    %v578 = vpop.f32.mrb[0].mxu0
    %v579 = vadd.f32 0.0, %v578
    %v580 = vpop.f32.mrb[0].mxu0
    %581 = vdwg.mxu0
    %v583 = vrot.slane %v579, 4
    %v585 = vadd.f32 %v258, %v583
    %v586 = vxor.u32 %v585, 2147483648
    %v587 = vmul.f32 %v586, 1.442695
    %v588 = vpow.pop %v587
    %v589 = vadd.f32 %v588, 1.0
    %v590 = vrcp.pop %v589
    %v591 = vmul.f32 1.0, %v590
    %v592 = vtanh.pop %v585
    %v594 = vrot.slane %v506, 4
    %595 = vrot.lane.b32.xlu0 %v594, 32
    %v596 = vpop.permute.xlu0 %595
    %v598 = vmul.f32 %v591, %v596
    %600 = vrot.lane.b32.xlu0 %v592, 64
    %v601 = vpop.permute.xlu0 %600
    %v603 = vmul.f32 %v591, %v601
    %605 = vrot.lane.b32.xlu0 %v603, 32
    %v606 = vpop.permute.xlu0 %605
    %v608 = vadd.f32 %v598, %v606
    %v609 = vtanh.pop %v608
    %611 = vrot.lane.b32.xlu0 %v609, 64
    %v612 = vpop.permute.xlu0 %611
    %v614 = vmul.f32 %v591, %v612
    %vm615 = vcmp.gt.s32.totalorder %v100, 2
    %v616 = vsel %vm615, 1, 0
    %617 = vset.pattern.permute.xlu0 0
    %618 = vperm.xlu0 %617, %v616
    %v619 = vpop.permute.xlu0 %618
    %vm620 = vcmp.eq.s32.totalorder %v619, 1
    %v622 = vrot.slane %v614, 4
    %623 = vrot.lane.b32.xlu0 %v622, 32
    %v624 = vpop.permute.xlu0 %623
    %v626 = vsel %vm620, %v624, %v497
    %v628 = vrot.slane %v608, 4
    %629 = vrot.lane.b32.xlu0 %v628, 96
    %v630 = vpop.permute.xlu0 %629
    %v632 = vsel %vm620, %v630, %v506
    %v633 = vsel %vm620, %v624, 0.0
    %634 = vst.msk [vmem:[#allocation3 + $0x4] sm:$0x3] %vm381, %v633
    %v636 = vsel %vm270, %v626, 0
    %638 = vmatprep.subr.mxu0 0.0
    %639 = vmatpush1.msra.mxu0 %v266
    %640 = vmatprep.subr.mxu0 0.0
    %641 = vmatpush1.msra.mxu0 %v267
    %642 = vmatprep.subr.mxu0 0.0
    %643 = vmatpush1.msra.mxu0 %v268
    %644 = vmatprep.subr.mxu0 0.0
    %645 = vmatpush1.msra.mxu0 %v269
    %646 = vmatprep.subr.mxu0 0.0
    %647 = vmatpush1.msra.mxu0 0.0
    %648 = vmatprep.subr.mxu0 0.0
    %649 = vmatpush1.msra.mxu0 0.0
    %650 = vmatprep.subr.mxu0 0.0
    %651 = vmatpush1.msra.mxu0 0.0
    %652 = vmatprep.subr.mxu0 0.0
    %653 = vmatpush1.msra.mxu0 0.0
    %654 = vmatprep.subr.mxu0 0.0
    %655 = vmatpush1.msra.mxu0 0.0
    %656 = vmatprep.subr.mxu0 0.0
    %657 = vmatpush1.msra.mxu0 0.0
    %658 = vmatprep.subr.mxu0 0.0
    %659 = vmatpush1.msra.mxu0 0.0
    %660 = vmatprep.subr.mxu0 0.0
    %661 = vmatpush1.msra.mxu0 0.0
    %662 = vmatprep.subr.mxu0 0.0
    %663 = vmatpush1.msra.mxu0 0.0
    %664 = vmatprep.subr.mxu0 0.0
    %665 = vmatpush1.msra.mxu0 0.0
    %666 = vmatprep.subr.mxu0 0.0
    %667 = vmatpush1.msra.mxu0 0.0
    %668 = vmatprep.subr.mxu0 0.0
    %669 = vmatpush1.msra.mxu0 0.0
    %670 = vmatprep.subr.mxu0 0.0
    %671 = vmatpush1.msra.mxu0 0.0
    %672 = vmatprep.subr.mxu0 0.0
    %673 = vmatpush1.msra.mxu0 0.0
    %674 = vmatprep.subr.mxu0 0.0
    %675 = vmatpush1.msra.mxu0 0.0
    %676 = vmatprep.subr.mxu0 0.0
    %677 = vmatpush1.msra.mxu0 0.0
    %678 = vmatprep.subr.mxu0 0.0
    %679 = vmatpush1.msra.mxu0 0.0
    %680 = vmatprep.subr.mxu0 0.0
    %681 = vmatpush1.msra.mxu0 0.0
    %682 = vmatprep.subr.mxu0 0.0
    %683 = vmatpush1.msra.mxu0 0.0
    %684 = vmatprep.subr.mxu0 0.0
    %685 = vmatpush1.msra.mxu0 0.0
    %686 = vmatprep.subr.mxu0 0.0
    %687 = vmatpush1.msra.mxu0 0.0
    %688 = vmatprep.subr.mxu0 0.0
    %689 = vmatpush1.msra.mxu0 0.0
    %690 = vmatprep.subr.mxu0 0.0
    %691 = vmatpush1.msra.mxu0 0.0
    %692 = vmatprep.subr.mxu0 0.0
    %693 = vmatpush1.msra.mxu0 0.0
    %694 = vmatprep.subr.mxu0 0.0
    %695 = vmatpush1.msra.mxu0 0.0
    %696 = vmatprep.subr.mxu0 0.0
    %697 = vmatpush1.msra.mxu0 0.0
    %698 = vmatprep.subr.mxu0 0.0
    %699 = vmatpush1.msra.mxu0 0.0
    %700 = vmatprep.subr.mxu0 0.0
    %701 = vmatpush1.msra.mxu0 0.0
    %702 = vmatprep.mubr.f32.mxu0 0.0
    %703 = vmatmul.mubr.f32.gmra.mrb[0].mxu0 %v636
    %v704 = vpop.f32.mrb[0].mxu0
    %v705 = vadd.f32 0.0, %v704
    %v706 = vpop.f32.mrb[0].mxu0
    %707 = vdwg.mxu0
    %v709 = vrot.slane %v705, 2
    %v711 = vadd.f32 %v258, %v709
    %v712 = vxor.u32 %v711, 2147483648
    %v713 = vmul.f32 %v712, 1.442695
    %v714 = vpow.pop %v713
    %v715 = vadd.f32 %v714, 1.0
    %v716 = vrcp.pop %v715
    %v717 = vmul.f32 1.0, %v716
    %v718 = vtanh.pop %v711
    %v720 = vrot.slane %v632, 2
    %721 = vrot.lane.b32.xlu0 %v720, 32
    %v722 = vpop.permute.xlu0 %721
    %v724 = vmul.f32 %v717, %v722
    %726 = vrot.lane.b32.xlu0 %v718, 64
    %v727 = vpop.permute.xlu0 %726
    %v729 = vmul.f32 %v717, %v727
    %731 = vrot.lane.b32.xlu0 %v729, 32
    %v732 = vpop.permute.xlu0 %731
    %v734 = vadd.f32 %v724, %v732
    %v735 = vtanh.pop %v734
    %737 = vrot.lane.b32.xlu0 %v735, 64
    %v738 = vpop.permute.xlu0 %737
    %v740 = vmul.f32 %v717, %v738
    %vm741 = vcmp.gt.s32.totalorder %v100, 3
    %v742 = vsel %vm741, 1, 0
    %743 = vset.pattern.permute.xlu0 0
    %744 = vperm.xlu0 %743, %v742
    %v745 = vpop.permute.xlu0 %744
    %vm746 = vcmp.eq.s32.totalorder %v745, 1
    %v748 = vrot.slane %v740, 6
    %749 = vrot.lane.b32.xlu0 %v748, 32
    %v750 = vpop.permute.xlu0 %749
    %v752 = vsel %vm746, %v750, %v626
    %v754 = vrot.slane %v734, 6
    %755 = vrot.lane.b32.xlu0 %v754, 96
    %v756 = vpop.permute.xlu0 %755
    %v758 = vsel %vm746, %v756, %v632
    %v759 = vsel %vm746, %v750, 0.0
    %760 = vst.msk [vmem:[#allocation3 + $0x6] sm:$0x3] %vm381, %v759
    %v762 = vsel %vm270, %v752, 0
    %764 = vmatprep.subr.mxu0 0.0
    %765 = vmatpush1.msra.mxu0 %v266
    %766 = vmatprep.subr.mxu0 0.0
    %767 = vmatpush1.msra.mxu0 %v267
    %768 = vmatprep.subr.mxu0 0.0
    %769 = vmatpush1.msra.mxu0 %v268
    %770 = vmatprep.subr.mxu0 0.0
    %771 = vmatpush1.msra.mxu0 %v269
    %772 = vmatprep.subr.mxu0 0.0
    %773 = vmatpush1.msra.mxu0 0.0
    %774 = vmatprep.subr.mxu0 0.0
    %775 = vmatpush1.msra.mxu0 0.0
    %776 = vmatprep.subr.mxu0 0.0
    %777 = vmatpush1.msra.mxu0 0.0
    %778 = vmatprep.subr.mxu0 0.0
    %779 = vmatpush1.msra.mxu0 0.0
    %780 = vmatprep.subr.mxu0 0.0
    %781 = vmatpush1.msra.mxu0 0.0
    %782 = vmatprep.subr.mxu0 0.0
    %783 = vmatpush1.msra.mxu0 0.0
    %784 = vmatprep.subr.mxu0 0.0
    %785 = vmatpush1.msra.mxu0 0.0
    %786 = vmatprep.subr.mxu0 0.0
    %787 = vmatpush1.msra.mxu0 0.0
    %788 = vmatprep.subr.mxu0 0.0
    %789 = vmatpush1.msra.mxu0 0.0
    %790 = vmatprep.subr.mxu0 0.0
    %791 = vmatpush1.msra.mxu0 0.0
    %792 = vmatprep.subr.mxu0 0.0
    %793 = vmatpush1.msra.mxu0 0.0
    %794 = vmatprep.subr.mxu0 0.0
    %795 = vmatpush1.msra.mxu0 0.0
    %796 = vmatprep.subr.mxu0 0.0
    %797 = vmatpush1.msra.mxu0 0.0
    %798 = vmatprep.subr.mxu0 0.0
    %799 = vmatpush1.msra.mxu0 0.0
    %800 = vmatprep.subr.mxu0 0.0
    %801 = vmatpush1.msra.mxu0 0.0
    %802 = vmatprep.subr.mxu0 0.0
    %803 = vmatpush1.msra.mxu0 0.0
    %804 = vmatprep.subr.mxu0 0.0
    %805 = vmatpush1.msra.mxu0 0.0
    %806 = vmatprep.subr.mxu0 0.0
    %807 = vmatpush1.msra.mxu0 0.0
    %808 = vmatprep.subr.mxu0 0.0
    %809 = vmatpush1.msra.mxu0 0.0
    %810 = vmatprep.subr.mxu0 0.0
    %811 = vmatpush1.msra.mxu0 0.0
    %812 = vmatprep.subr.mxu0 0.0
    %813 = vmatpush1.msra.mxu0 0.0
    %814 = vmatprep.subr.mxu0 0.0
    %815 = vmatpush1.msra.mxu0 0.0
    %816 = vmatprep.subr.mxu0 0.0
    %817 = vmatpush1.msra.mxu0 0.0
    %818 = vmatprep.subr.mxu0 0.0
    %819 = vmatpush1.msra.mxu0 0.0
    %820 = vmatprep.subr.mxu0 0.0
    %821 = vmatpush1.msra.mxu0 0.0
    %822 = vmatprep.subr.mxu0 0.0
    %823 = vmatpush1.msra.mxu0 0.0
    %824 = vmatprep.subr.mxu0 0.0
    %825 = vmatpush1.msra.mxu0 0.0
    %826 = vmatprep.subr.mxu0 0.0
    %827 = vmatpush1.msra.mxu0 0.0
    %828 = vmatprep.mubr.f32.mxu0 0.0
    %829 = vmatmul.mubr.f32.gmra.mrb[0].mxu0 %v762
    %v830 = vpop.f32.mrb[0].mxu0
    %v831 = vadd.f32 0.0, %v830
    %v832 = vpop.f32.mrb[0].mxu0
    %833 = vdwg.mxu0
    %v834 = vadd.f32 %v263, %v831
    %v835 = vxor.u32 %v834, 2147483648
    %v836 = vmul.f32 %v835, 1.442695
    %v837 = vpow.pop %v836
    %v838 = vadd.f32 %v837, 1.0
    %v839 = vrcp.pop %v838
    %v840 = vmul.f32 1.0, %v839
    %v841 = vtanh.pop %v834
    %843 = vrot.lane.b32.xlu0 %v758, 32
    %v844 = vpop.permute.xlu0 %843
    %v846 = vmul.f32 %v840, %v844
    %848 = vrot.lane.b32.xlu0 %v841, 64
    %v849 = vpop.permute.xlu0 %848
    %v851 = vmul.f32 %v840, %v849
    %853 = vrot.lane.b32.xlu0 %v851, 32
    %v854 = vpop.permute.xlu0 %853
    %v856 = vadd.f32 %v846, %v854
    %v857 = vtanh.pop %v856
    %859 = vrot.lane.b32.xlu0 %v857, 64
    %v860 = vpop.permute.xlu0 %859
    %v862 = vmul.f32 %v840, %v860
    %vm863 = vcmp.gt.s32.totalorder %v100, 4
    %v864 = vsel %vm863, 1, 0
    %865 = vset.pattern.permute.xlu0 0
    %866 = vperm.xlu0 %865, %v864
    %v867 = vpop.permute.xlu0 %866
    %vm868 = vcmp.eq.s32.totalorder %v867, 1
    %869 = vrot.lane.b32.xlu0 %v752, 96
    %v870 = vpop.permute.xlu0 %869
    %v872 = vsel %vm868, %v862, %v870
    %v873 = vsel %vm868, %v856, %v844
    %v874 = vsel %vm868, %v862, 0.0
    %876 = vrot.lane.b32.xlu0 %v874, 32
    %v877 = vpop.permute.xlu0 %876
    %879 = vst.msk [vmem:[#allocation3 + $0x8] sm:$0x3] %vm381, %v877
    %881 = vrot.lane.b32.xlu0 %v872, 32
    %v882 = vpop.permute.xlu0 %881
    %v883 = vsel %vm270, %v882, 0
    %885 = vmatprep.subr.mxu0 0.0
    %886 = vmatpush1.msra.mxu0 %v266
    %887 = vmatprep.subr.mxu0 0.0
    %888 = vmatpush1.msra.mxu0 %v267
    %889 = vmatprep.subr.mxu0 0.0
    %890 = vmatpush1.msra.mxu0 %v268
    %891 = vmatprep.subr.mxu0 0.0
    %892 = vmatpush1.msra.mxu0 %v269
    %893 = vmatprep.subr.mxu0 0.0
    %894 = vmatpush1.msra.mxu0 0.0
    %895 = vmatprep.subr.mxu0 0.0
    %896 = vmatpush1.msra.mxu0 0.0
    %897 = vmatprep.subr.mxu0 0.0
    %898 = vmatpush1.msra.mxu0 0.0
    %899 = vmatprep.subr.mxu0 0.0
    %900 = vmatpush1.msra.mxu0 0.0
    %901 = vmatprep.subr.mxu0 0.0
    %902 = vmatpush1.msra.mxu0 0.0
    %903 = vmatprep.subr.mxu0 0.0
    %904 = vmatpush1.msra.mxu0 0.0
    %905 = vmatprep.subr.mxu0 0.0
    %906 = vmatpush1.msra.mxu0 0.0
    %907 = vmatprep.subr.mxu0 0.0
    %908 = vmatpush1.msra.mxu0 0.0
    %909 = vmatprep.subr.mxu0 0.0
    %910 = vmatpush1.msra.mxu0 0.0
    %911 = vmatprep.subr.mxu0 0.0
    %912 = vmatpush1.msra.mxu0 0.0
    %913 = vmatprep.subr.mxu0 0.0
    %914 = vmatpush1.msra.mxu0 0.0
    %915 = vmatprep.subr.mxu0 0.0
    %916 = vmatpush1.msra.mxu0 0.0
    %917 = vmatprep.subr.mxu0 0.0
    %918 = vmatpush1.msra.mxu0 0.0
    %919 = vmatprep.subr.mxu0 0.0
    %920 = vmatpush1.msra.mxu0 0.0
    %921 = vmatprep.subr.mxu0 0.0
    %922 = vmatpush1.msra.mxu0 0.0
    %923 = vmatprep.subr.mxu0 0.0
    %924 = vmatpush1.msra.mxu0 0.0
    %925 = vmatprep.subr.mxu0 0.0
    %926 = vmatpush1.msra.mxu0 0.0
    %927 = vmatprep.subr.mxu0 0.0
    %928 = vmatpush1.msra.mxu0 0.0
    %929 = vmatprep.subr.mxu0 0.0
    %930 = vmatpush1.msra.mxu0 0.0
    %931 = vmatprep.subr.mxu0 0.0
    %932 = vmatpush1.msra.mxu0 0.0
    %933 = vmatprep.subr.mxu0 0.0
    %934 = vmatpush1.msra.mxu0 0.0
    %935 = vmatprep.subr.mxu0 0.0
    %936 = vmatpush1.msra.mxu0 0.0
    %937 = vmatprep.subr.mxu0 0.0
    %938 = vmatpush1.msra.mxu0 0.0
    %939 = vmatprep.subr.mxu0 0.0
    %940 = vmatpush1.msra.mxu0 0.0
    %941 = vmatprep.subr.mxu0 0.0
    %942 = vmatpush1.msra.mxu0 0.0
    %943 = vmatprep.subr.mxu0 0.0
    %944 = vmatpush1.msra.mxu0 0.0
    %945 = vmatprep.subr.mxu0 0.0
    %946 = vmatpush1.msra.mxu0 0.0
    %947 = vmatprep.subr.mxu0 0.0
    %948 = vmatpush1.msra.mxu0 0.0
    %949 = vmatprep.mubr.f32.mxu0 0.0
    %950 = vmatmul.mubr.f32.gmra.mrb[0].mxu0 %v883
    %v951 = vpop.f32.mrb[0].mxu0
    %v952 = vadd.f32 0.0, %v951
    %v953 = vpop.f32.mrb[0].mxu0
    %954 = vdwg.mxu0
    %v956 = vrot.slane %v952, 6
    %v958 = vadd.f32 %v263, %v956
    %v959 = vxor.u32 %v958, 2147483648
    %v960 = vmul.f32 %v959, 1.442695
    %v961 = vpow.pop %v960
    %v962 = vadd.f32 %v961, 1.0
    %v963 = vrcp.pop %v962
    %v964 = vmul.f32 1.0, %v963
    %v965 = vtanh.pop %v958
    %v967 = vrot.slane %v873, 6
    %v969 = vmul.f32 %v964, %v967
    %971 = vrot.lane.b32.xlu0 %v965, 64
    %v972 = vpop.permute.xlu0 %971
    %v974 = vmul.f32 %v964, %v972
    %976 = vrot.lane.b32.xlu0 %v974, 32
    %v977 = vpop.permute.xlu0 %976
    %v979 = vadd.f32 %v969, %v977
    %v980 = vtanh.pop %v979
    %982 = vrot.lane.b32.xlu0 %v980, 64
    %v983 = vpop.permute.xlu0 %982
    %v985 = vmul.f32 %v964, %v983
    %vm986 = vcmp.gt.s32.totalorder %v100, 5
    %v987 = vsel %vm986, 1, 0
    %988 = vset.pattern.permute.xlu0 0
    %989 = vperm.xlu0 %988, %v987
    %v990 = vpop.permute.xlu0 %989
    %vm991 = vcmp.eq.s32.totalorder %v990, 1
    %v993 = vrot.slane %v985, 2
    %994 = vrot.lane.b32.xlu0 %v993, 32
    %v995 = vpop.permute.xlu0 %994
    %v997 = vsel %vm991, %v995, 0.0
    %998 = vst.msk [vmem:[#allocation3 + $0xa] sm:$0x3] %vm381, %v997
    %v999 = vld [vmem:[#allocation3] sm:$0xff]
    %v1000 = vld [vmem:[#allocation3 + $0x8] sm:$0xf]
    %v1001 = vld [vmem:[#allocation10] sm:$0xff]
    %v1002 = vld [vmem:[#allocation10 + $0x8] sm:$0xff]
    %v1003 = vld [vmem:[#allocation10 + $0x10] sm:$0xff]
    %v1004 = vld [vmem:[#allocation10 + $0x18] sm:$0xff]
    %v1005 = vld [vmem:[%s6] sm:$0x1]
    %v1007 = vlaneseq
    %v1008 = vshrl.u32 %v1007, 7
    %v1009 = vsub.s32 0, %v1008
    %v1010 = vrot.slane %v1005, %v1009
    %v1013 = vsel %vm270, %v999, 0
    %v1016 = vsel %vm270, %v1000, 0
    %1018 = vmatprep.subr.mxu0 0.0
    %1019 = vmatpush1.msra.mxu0 %v1001
    %1020 = vmatprep.subr.mxu0 0.0
    %1021 = vmatpush1.msra.mxu0 %v1002
    %1022 = vmatprep.subr.mxu0 0.0
    %1023 = vmatpush1.msra.mxu0 %v1003
    %1024 = vmatprep.subr.mxu0 0.0
    %1025 = vmatpush1.msra.mxu0 %v1004
    %1026 = vmatprep.subr.mxu0 0.0
    %1027 = vmatpush1.msra.mxu0 0.0
    %1028 = vmatprep.subr.mxu0 0.0
    %1029 = vmatpush1.msra.mxu0 0.0
    %1030 = vmatprep.subr.mxu0 0.0
    %1031 = vmatpush1.msra.mxu0 0.0
    %1032 = vmatprep.subr.mxu0 0.0
    %1033 = vmatpush1.msra.mxu0 0.0
    %1034 = vmatprep.subr.mxu0 0.0
    %1035 = vmatpush1.msra.mxu0 0.0
    %1036 = vmatprep.subr.mxu0 0.0
    %1037 = vmatpush1.msra.mxu0 0.0
    %1038 = vmatprep.subr.mxu0 0.0
    %1039 = vmatpush1.msra.mxu0 0.0
    %1040 = vmatprep.subr.mxu0 0.0
    %1041 = vmatpush1.msra.mxu0 0.0
    %1042 = vmatprep.subr.mxu0 0.0
    %1043 = vmatpush1.msra.mxu0 0.0
    %1044 = vmatprep.subr.mxu0 0.0
    %1045 = vmatpush1.msra.mxu0 0.0
    %1046 = vmatprep.subr.mxu0 0.0
    %1047 = vmatpush1.msra.mxu0 0.0
    %1048 = vmatprep.subr.mxu0 0.0
    %1049 = vmatpush1.msra.mxu0 0.0
    %1050 = vmatprep.subr.mxu0 0.0
    %1051 = vmatpush1.msra.mxu0 0.0
    %1052 = vmatprep.subr.mxu0 0.0
    %1053 = vmatpush1.msra.mxu0 0.0
    %1054 = vmatprep.subr.mxu0 0.0
    %1055 = vmatpush1.msra.mxu0 0.0
    %1056 = vmatprep.subr.mxu0 0.0
    %1057 = vmatpush1.msra.mxu0 0.0
    %1058 = vmatprep.subr.mxu0 0.0
    %1059 = vmatpush1.msra.mxu0 0.0
    %1060 = vmatprep.subr.mxu0 0.0
    %1061 = vmatpush1.msra.mxu0 0.0
    %1062 = vmatprep.subr.mxu0 0.0
    %1063 = vmatpush1.msra.mxu0 0.0
    %1064 = vmatprep.subr.mxu0 0.0
    %1065 = vmatpush1.msra.mxu0 0.0
    %1066 = vmatprep.subr.mxu0 0.0
    %1067 = vmatpush1.msra.mxu0 0.0
    %1068 = vmatprep.subr.mxu0 0.0
    %1069 = vmatpush1.msra.mxu0 0.0
    %1070 = vmatprep.subr.mxu0 0.0
    %1071 = vmatpush1.msra.mxu0 0.0
    %1072 = vmatprep.subr.mxu0 0.0
    %1073 = vmatpush1.msra.mxu0 0.0
    %1074 = vmatprep.subr.mxu0 0.0
    %1075 = vmatpush1.msra.mxu0 0.0
    %1076 = vmatprep.subr.mxu0 0.0
    %1077 = vmatpush1.msra.mxu0 0.0
    %1078 = vmatprep.subr.mxu0 0.0
    %1079 = vmatpush1.msra.mxu0 0.0
    %1080 = vmatprep.subr.mxu0 0.0
    %1081 = vmatpush1.msra.mxu0 0.0
    %1082 = vmatprep.mubr.f32.mxu0 0.0
    %1083 = vmatmul.mubr.f32.gmra.mrb[0].mxu0 %v1013
    %v1084 = vpop.f32.mrb[0].mxu0
    %v1085 = vadd.f32 %v1010, %v1084
    %v1086 = vpop.f32.mrb[0].mxu0
    %1087 = vmatprep.mubr.f32.mxu0 0.0
    %1088 = vmatmul.mubr.f32.gmra.mrb[0].mxu0 %v1016
    %v1089 = vpop.f32.mrb[0].mxu0
    %v1090 = vadd.f32 %v1010, %v1089
    %v1091 = vpop.f32.mrb[0].mxu0
    %1092 = vdwg.mxu0
    %v1093 = vtanh.pop %v1085
    %v1094 = vtanh.pop %v1090
    %v1095 = vld [vmem:[#allocation12] sm:$0xff]
    %v1096 = vld [vmem:[#allocation12 + $0x8] sm:$0xff]
    %v1097 = vld [vmem:[#allocation12 + $0x10] sm:$0xff]
    %v1098 = vld [vmem:[#allocation12 + $0x18] sm:$0xff]
    %v1099 = vld [vmem:[#allocation12 + $0x20] sm:$0xff]
    %v1100 = vld [vmem:[#allocation12 + $0x28] sm:$0xff]
    %v1101 = vld [vmem:[#allocation12 + $0x30] sm:$0xff]
    %v1102 = vld [vmem:[#allocation12 + $0x38] sm:$0xff]
    %v1103 = vld [vmem:[#allocation12 + $0x40] sm:$0xff]
    %v1104 = vld [vmem:[#allocation12 + $0x48] sm:$0xff]
    %v1105 = vld [vmem:[#allocation12 + $0x50] sm:$0xff]
    %v1106 = vld [vmem:[#allocation12 + $0x58] sm:$0xff]
    %v1107 = vld [vmem:[#allocation12 + $0x60] sm:$0xff]
    %v1108 = vld [vmem:[#allocation12 + $0x68] sm:$0xff]
    %v1109 = vld [vmem:[#allocation12 + $0x70] sm:$0xff]
    %v1110 = vld [vmem:[#allocation12 + $0x78] sm:$0xff]
    %v1111 = vld [vmem:[%s8] sm:$0x1]
    %v1113 = vlaneseq
    %v1114 = vshrl.u32 %v1113, 7
    %v1115 = vsub.s32 0, %v1114
    %v1116 = vrot.slane %v1111, %v1115
    %1118 = vmatprep.subr.mxu0 0.0
    %1119 = vmatpush1.msra.mxu0 %v1095
    %1120 = vmatprep.subr.mxu0 0.0
    %1121 = vmatpush1.msra.mxu0 %v1096
    %1122 = vmatprep.subr.mxu0 0.0
    %1123 = vmatpush1.msra.mxu0 %v1097
    %1124 = vmatprep.subr.mxu0 0.0
    %1125 = vmatpush1.msra.mxu0 %v1098
    %1126 = vmatprep.subr.mxu0 0.0
    %1127 = vmatpush1.msra.mxu0 %v1099
    %1128 = vmatprep.subr.mxu0 0.0
    %1129 = vmatpush1.msra.mxu0 %v1100
    %1130 = vmatprep.subr.mxu0 0.0
    %1131 = vmatpush1.msra.mxu0 %v1101
    %1132 = vmatprep.subr.mxu0 0.0
    %1133 = vmatpush1.msra.mxu0 %v1102
    %1134 = vmatprep.subr.mxu0 0.0
    %1135 = vmatpush1.msra.mxu0 %v1103
    %1136 = vmatprep.subr.mxu0 0.0
    %1137 = vmatpush1.msra.mxu0 %v1104
    %1138 = vmatprep.subr.mxu0 0.0
    %1139 = vmatpush1.msra.mxu0 %v1105
    %1140 = vmatprep.subr.mxu0 0.0
    %1141 = vmatpush1.msra.mxu0 %v1106
    %1142 = vmatprep.subr.mxu0 0.0
    %1143 = vmatpush1.msra.mxu0 %v1107
    %1144 = vmatprep.subr.mxu0 0.0
    %1145 = vmatpush1.msra.mxu0 %v1108
    %1146 = vmatprep.subr.mxu0 0.0
    %1147 = vmatpush1.msra.mxu0 %v1109
    %1148 = vmatprep.subr.mxu0 0.0
    %1149 = vmatpush1.msra.mxu0 %v1110
    %1150 = vmatprep.subr.mxu0 0.0
    %1151 = vmatpush1.msra.mxu0 0.0
    %1152 = vmatprep.subr.mxu0 0.0
    %1153 = vmatpush1.msra.mxu0 0.0
    %1154 = vmatprep.subr.mxu0 0.0
    %1155 = vmatpush1.msra.mxu0 0.0
    %1156 = vmatprep.subr.mxu0 0.0
    %1157 = vmatpush1.msra.mxu0 0.0
    %1158 = vmatprep.subr.mxu0 0.0
    %1159 = vmatpush1.msra.mxu0 0.0
    %1160 = vmatprep.subr.mxu0 0.0
    %1161 = vmatpush1.msra.mxu0 0.0
    %1162 = vmatprep.subr.mxu0 0.0
    %1163 = vmatpush1.msra.mxu0 0.0
    %1164 = vmatprep.subr.mxu0 0.0
    %1165 = vmatpush1.msra.mxu0 0.0
    %1166 = vmatprep.subr.mxu0 0.0
    %1167 = vmatpush1.msra.mxu0 0.0
    %1168 = vmatprep.subr.mxu0 0.0
    %1169 = vmatpush1.msra.mxu0 0.0
    %1170 = vmatprep.subr.mxu0 0.0
    %1171 = vmatpush1.msra.mxu0 0.0
    %1172 = vmatprep.subr.mxu0 0.0
    %1173 = vmatpush1.msra.mxu0 0.0
    %1174 = vmatprep.subr.mxu0 0.0
    %1175 = vmatpush1.msra.mxu0 0.0
    %1176 = vmatprep.subr.mxu0 0.0
    %1177 = vmatpush1.msra.mxu0 0.0
    %1178 = vmatprep.subr.mxu0 0.0
    %1179 = vmatpush1.msra.mxu0 0.0
    %1180 = vmatprep.subr.mxu0 0.0
    %1181 = vmatpush1.msra.mxu0 0.0
    %1182 = vmatprep.mubr.f32.mxu0 0.0
    %1183 = vmatmul.mubr.f32.gmra.mrb[0].mxu0 %v1093
    %v1184 = vpop.f32.mrb[0].mxu0
    %v1185 = vadd.f32 %v1116, %v1184
    %v1186 = vpop.f32.mrb[0].mxu0
    %1187 = vmatprep.mubr.f32.mxu0 0.0
    %1188 = vmatmul.mubr.f32.gmra.mrb[0].mxu0 %v1094
    %v1189 = vpop.f32.mrb[0].mxu0
    %v1190 = vadd.f32 %v1116, %v1189
    %v1191 = vpop.f32.mrb[0].mxu0
    %1192 = vdwg.mxu0
    %v1194 = vrot.slane %v1185, 2
    %v1196 = vmax.f32 %v1185, %v1194
    %v1197 = vrot.slane %v1185, 4
    %v1199 = vmax.f32 %v1196, %v1197
    %v1200 = vrot.slane %v1185, 6
    %v1202 = vmax.f32 %v1199, %v1200
    %v1203 = vmax.f32 %v1202, %v1190
    %v1205 = vrot.slane %v1190, 2
    %v1207 = vmax.f32 %v1203, %v1205
    %v1208 = vsub.f32 %v1185, %v1207
    %v1209 = vmul.f32 %v1208, 1.442695
    %v1210 = vpow.pop %v1209
    %v1212 = vrot.slane %v1207, 6
    %v1214 = vsub.f32 %v1185, %v1212
    %v1215 = vmul.f32 %v1214, 1.442695
    %v1216 = vpow.pop %v1215
    %v1217 = vrot.slane %v1207, 4
    %v1219 = vsub.f32 %v1185, %v1217
    %v1220 = vmul.f32 %v1219, 1.442695
    %v1221 = vpow.pop %v1220
    %v1222 = vrot.slane %v1207, 2
    %v1224 = vsub.f32 %v1185, %v1222
    %v1225 = vmul.f32 %v1224, 1.442695
    %v1226 = vpow.pop %v1225
    %v1227 = vsub.f32 %v1190, %v1207
    %v1228 = vmul.f32 %v1227, 1.442695
    %v1229 = vpow.pop %v1228
    %v1230 = vsub.f32 %v1190, %v1212
    %v1231 = vmul.f32 %v1230, 1.442695
    %v1232 = vpow.pop %v1231
    %v1234 = vrot.slane %v1216, 2
    %v1236 = vadd.f32 %v1210, %v1234
    %v1238 = vrot.slane %v1221, 4
    %v1240 = vadd.f32 %v1236, %v1238
    %v1242 = vrot.slane %v1226, 6
    %v1244 = vadd.f32 %v1240, %v1242
    %v1245 = vadd.f32 %v1244, %v1229
    %v1247 = vrot.slane %v1232, 2
    %v1249 = vadd.f32 %v1245, %v1247
    %v1250 = vrcp.pop %v1249
    %v1251 = vmul.f32 %v1210, %v1250
    %v1253 = vrot.slane %v1250, 6
    %v1255 = vmul.f32 %v1216, %v1253
    %v1256 = vrot.slane %v1250, 4
    %v1258 = vmul.f32 %v1221, %v1256
    %v1259 = vrot.slane %v1250, 2
    %v1261 = vmul.f32 %v1226, %v1259
    %v1262 = vmul.f32 %v1229, %v1250
    %v1263 = vmul.f32 %v1232, %v1253
    %v1264 = vmul.f32 %v1251, %v999
    %v1265 = vadd.f32 %v1264, 0.0
    %v1266 = vmul.f32 %v1255, %v999
    %v1268 = vrot.slane %v1266, 2
    %v1270 = vadd.f32 %v1265, %v1268
    %v1271 = vmul.f32 %v1258, %v999
    %v1273 = vrot.slane %v1271, 4
    %v1275 = vadd.f32 %v1270, %v1273
    %v1276 = vmul.f32 %v1261, %v999
    %v1278 = vrot.slane %v1276, 6
    %v1280 = vadd.f32 %v1275, %v1278
    %v1281 = vmul.f32 %v1262, %v1000
    %v1282 = vadd.f32 %v1280, %v1281
    %v1283 = vmul.f32 %v1263, %v1000
    %v1285 = vrot.slane %v1283, 2
    %v1287 = vadd.f32 %v1282, %v1285
    %1288 = vrot.lane.b32.xlu0 %v999, 32
    %v1289 = vpop.permute.xlu0 %1288
    %v1291 = vmul.f32 %v1251, %v1289
    %v1292 = vadd.f32 %v1291, 0.0
    %v1293 = vmul.f32 %v1255, %v1289
    %v1295 = vrot.slane %v1293, 2
    %v1297 = vadd.f32 %v1292, %v1295
    %v1298 = vmul.f32 %v1258, %v1289
    %v1300 = vrot.slane %v1298, 4
    %v1302 = vadd.f32 %v1297, %v1300
    %v1303 = vmul.f32 %v1261, %v1289
    %v1305 = vrot.slane %v1303, 6
    %v1307 = vadd.f32 %v1302, %v1305
    %1308 = vrot.lane.b32.xlu0 %v1000, 32
    %v1309 = vpop.permute.xlu0 %1308
    %v1311 = vmul.f32 %v1262, %v1309
    %v1312 = vadd.f32 %v1307, %v1311
    %v1313 = vmul.f32 %v1263, %v1309
    %v1315 = vrot.slane %v1313, 2
    %v1317 = vadd.f32 %v1312, %v1315
    %1318 = vrot.lane.b32.xlu0 %v999, 64
    %v1319 = vpop.permute.xlu0 %1318
    %v1321 = vmul.f32 %v1251, %v1319
    %v1322 = vadd.f32 %v1321, 0.0
    %v1323 = vmul.f32 %v1255, %v1319
    %v1325 = vrot.slane %v1323, 2
    %v1327 = vadd.f32 %v1322, %v1325
    %v1328 = vmul.f32 %v1258, %v1319
    %v1330 = vrot.slane %v1328, 4
    %v1332 = vadd.f32 %v1327, %v1330
    %v1333 = vmul.f32 %v1261, %v1319
    %v1335 = vrot.slane %v1333, 6
    %v1337 = vadd.f32 %v1332, %v1335
    %1338 = vrot.lane.b32.xlu0 %v1000, 64
    %v1339 = vpop.permute.xlu0 %1338
    %v1341 = vmul.f32 %v1262, %v1339
    %v1342 = vadd.f32 %v1337, %v1341
    %v1343 = vmul.f32 %v1263, %v1339
    %v1345 = vrot.slane %v1343, 2
    %v1347 = vadd.f32 %v1342, %v1345
    %1348 = vrot.lane.b32.xlu0 %v999, 96
    %v1349 = vpop.permute.xlu0 %1348
    %v1351 = vmul.f32 %v1251, %v1349
    %v1352 = vadd.f32 %v1351, 0.0
    %v1353 = vmul.f32 %v1255, %v1349
    %v1355 = vrot.slane %v1353, 2
    %v1357 = vadd.f32 %v1352, %v1355
    %v1358 = vmul.f32 %v1258, %v1349
    %v1360 = vrot.slane %v1358, 4
    %v1362 = vadd.f32 %v1357, %v1360
    %v1363 = vmul.f32 %v1261, %v1349
    %v1365 = vrot.slane %v1363, 6
    %v1367 = vadd.f32 %v1362, %v1365
    %1368 = vrot.lane.b32.xlu0 %v1000, 96
    %v1369 = vpop.permute.xlu0 %1368
    %v1371 = vmul.f32 %v1262, %v1369
    %v1372 = vadd.f32 %v1367, %v1371
    %v1373 = vmul.f32 %v1263, %v1369
    %v1375 = vrot.slane %v1373, 2
    %v1377 = vadd.f32 %v1372, %v1375
    %v1378 = vmul.f32 %v1287, %v1287
    %v1379 = vsel %vm381, %v1378, 0.0
    %1380 = vadd.xlane.f32.xlu0 %v1379
    %v1381 = vpop.xlane.xlu0 %1380
    %v1382 = vadd.f32 %v1381, 0.0
    %v1383 = vmul.f32 %v1317, %v1317
    %1385 = vrot.lane.b32.xlu0 %v1383, 96
    %v1386 = vpop.permute.xlu0 %1385
    %v1388 = vsel %vm381, %v1386, 0.0
    %1389 = vadd.xlane.f32.xlu0 %v1388
    %v1390 = vpop.xlane.xlu0 %1389
    %v1391 = vadd.f32 %v1382, %v1390
    %v1392 = vmul.f32 %v1347, %v1347
    %1394 = vrot.lane.b32.xlu0 %v1392, 64
    %v1395 = vpop.permute.xlu0 %1394
    %v1397 = vsel %vm381, %v1395, 0.0
    %1398 = vadd.xlane.f32.xlu0 %v1397
    %v1399 = vpop.xlane.xlu0 %1398
    %v1400 = vadd.f32 %v1391, %v1399
    %v1401 = vmul.f32 %v1377, %v1377
    %1403 = vrot.lane.b32.xlu0 %v1401, 32
    %v1404 = vpop.permute.xlu0 %1403
    %v1406 = vsel %vm381, %v1404, 0.0
    %1407 = vadd.xlane.f32.xlu0 %v1406
    %v1408 = vpop.xlane.xlu0 %1407
    %v1409 = vadd.f32 %v1400, %v1408
    %v1410 = vmax.f32 %v1409, 1e-24
    %v1411 = vrsqrt.pop %v1410
    %v1412 = vmul.f32 %v1287, %v1411
    %1413 = vst.msk [vmem:[#allocation13] sm:$0x3] %vm381, %v1412
    %v1414 = vmul.f32 %v1317, %v1411
    %vm1415 = vcmask 517376
    %1416 = vst.msk [vmem:[#allocation13] sm:$0x3] %vm1415, %v1414
    %v1417 = vmul.f32 %v1347, %v1411
    %vm1418 = vcmask 779776
    %1419 = vst.msk [vmem:[#allocation13] sm:$0x3] %vm1418, %v1417
    %v1420 = vmul.f32 %v1377, %v1411
    %vm1421 = vcmask 1042176
    %1422 = vst.msk [vmem:[#allocation13] sm:$0x3] %vm1421, %v1420
    // Predicated region
    $region58: #{tpu_custom_call.1} parent=1 // pred_check
      _
    $region59: #{tpu_custom_call.1} parent=1 // pred_check_branch
      %1424 = sbr.rel (0) target = $region61
    $region60: #{tpu_custom_call.1} parent=1 // pred_region
      %s1426 = ssub.s32 32, 32
      %1427 = vsyncadd [#allocation6], %s1426
      %s1429 = sshll.u32 [#allocation13], 4
      %s1430 = int_to_ptr.vmem [resolvable:$true] %s1429
      %1432 = dma.vmem_to_hbm [thread:$0]  %s1430, 32, %s9, [#allocation6]
    $region61: #{tpu_custom_call.1} parent=1 // pred_fallthru
      _
    // Predicated region
    $region62: #{tpu_custom_call.1} parent=1 // pred_check
      _
    $region63: #{tpu_custom_call.1} parent=1 // pred_check_branch
      %1434 = sbr.rel (0) target = $region65
    $region64: #{tpu_custom_call.1} parent=1 // pred_region
      %1435 = dma.done [#allocation6], 32
    $region65: #{tpu_custom_call.1} parent=1 // pred_fallthru
      _
    %1436 = vsyncpa [#allocation5], 1
    %1437 = vsyncpa [#allocation8], 1
    %1438 = vsyncpa [#allocation11], 1
    %1439 = vsyncpa [#allocation6], 1

</llo_original>
